<compile_context>
chip_gen: v5e
topology: v5e:2x2
jax: 0.10.0
libtpu: 0.0.40
codegen_flags: <defaults>
</compile_context>

<pallas_src>
import math
import functools

import jax
import jax.numpy as jnp
from jax.experimental import pallas as pl
from jax.experimental.pallas import tpu as pltpu


# ----------------------------- config (small, Llama-like) -----------------------------
BATCH = 2
SEQ = 8
HIDDEN = 128
N_HEADS = 4
N_KV_HEADS = 2                         # grouped-query attention
HEAD_DIM = HIDDEN // N_HEADS           # 32
KV_HIDDEN = N_KV_HEADS * HEAD_DIM      # 64
INTERMEDIATE = 256
RMS_EPS = 1e-6
ROPE_THETA = 10000.0

TOKENS = BATCH * SEQ                   # batch folded into the row axis: (16, 128)


def _rms_norm(x, w, eps):
    # Llama computes the variance in fp32.
    xf = x.astype(jnp.float32)
    var = jnp.mean(xf * xf, axis=-1, keepdims=True)
    return (xf * jax.lax.rsqrt(var + eps)) * w


def decoder_layer_kernel(x_ref, cos_ref, sin_ref, mask_ref,
                         ln1_ref, wqkv_ref, wo_ref,
                         ln2_ref, wgu_ref, wd_ref,
                         out_ref,
                         *, n_heads, head_dim, hidden, intermediate, eps):
    x = x_ref[...]                                           # (T, H) fp32

    # ---------------- input_layernorm ----------------
    h = _rms_norm(x, ln1_ref[...], eps)                      # (T, H) fp32

    # ------- fused [q | k | q_swap | k_swap | v] projection (bf16 MXU, fp32 acc) -------
    qkv = jnp.dot(h.astype(jnp.bfloat16), wqkv_ref[...],
                  preferred_element_type=jnp.float32)        # (T, 5H)

    # RoPE: rotate-half permutation folded into the "swap" weight columns host-side and
    # the sign folded into sin, so this is one full-lane-width elementwise FMA.
    qk = qkv[:, :2 * hidden] * cos_ref[...] + qkv[:, 2 * hidden:4 * hidden] * sin_ref[...]
    q = qk[:, :hidden].astype(jnp.bfloat16)                  # (T, H)  1/sqrt(hd) prefolded into wq
    k = qk[:, hidden:].astype(jnp.bfloat16)                  # (T, H)  GQA-expanded per query head
    v = qkv[:, 4 * hidden:].astype(jnp.bfloat16)             # (T, H)  GQA-expanded per query head

    mask = mask_ref[...]                                     # (T, T) additive block-diag causal mask

    head_outs = []
    for hh in range(n_heads):                                # static, unrolled over heads
        sl = slice(hh * head_dim, (hh + 1) * head_dim)
        # q @ k^T without an explicit transpose (contract last dims)
        s = jax.lax.dot_general(q[:, sl], k[:, sl], (((1,), (1,)), ((), ())),
                                preferred_element_type=jnp.float32)        # (T, T)
        s = s + mask
        s = s - jnp.max(s, axis=-1, keepdims=True)
        p = jnp.exp(s)
        p = p * pl.reciprocal(jnp.sum(p, axis=-1, keepdims=True), approx=True)
        head_outs.append(jnp.dot(p.astype(jnp.bfloat16), v[:, sl],
                                 preferred_element_type=jnp.float32))      # (T, hd)

    attn = jnp.concatenate(head_outs, axis=-1).astype(jnp.bfloat16)        # (T, H)
    attn_out = jnp.dot(attn, wo_ref[...], preferred_element_type=jnp.float32)

    x = x + attn_out                                         # first residual (fp32)

    # ---------------- post_attention_layernorm + fused gate|up MLP ----------------
    h2 = _rms_norm(x, ln2_ref[...], eps)
    gu = jnp.dot(h2.astype(jnp.bfloat16), wgu_ref[...],
                 preferred_element_type=jnp.float32)         # (T, 2I)
    act = jax.nn.silu(gu[:, :intermediate]) * gu[:, intermediate:]
    mlp_out = jnp.dot(act.astype(jnp.bfloat16), wd_ref[...],
                      preferred_element_type=jnp.float32)

    out_ref[...] = (x + mlp_out).astype(out_ref.dtype)


# ----------------------------- one-time host-side prep (hoisted out of forward) -----------------------------
def _swap_head_halves(w, n_heads, head_dim):
    # per output head, swap the two halves of that head's column block (no sign)
    d2 = head_dim // 2
    h_in = w.shape[0]
    return w.reshape(h_in, n_heads, 2, d2)[:, :, ::-1, :].reshape(h_in, n_heads * head_dim)


def prepare_layer(params, cos, sin):
    """Weight fusion, GQA expansion, rotary tiling and mask construction -- done once, reused per call."""
    hd, d2 = HEAD_DIM, HEAD_DIM // 2
    group = N_HEADS // N_KV_HEADS
    scale = 1.0 / math.sqrt(hd)

    wq = params["wq"] * scale                                             # (H, H), softmax scale folded in
    # GQA-expand K/V weights to one 128-lane-aligned column block per *query* head.
    expand = lambda w: jnp.repeat(w.reshape(HIDDEN, N_KV_HEADS, hd),
                                  group, axis=1).reshape(HIDDEN, HIDDEN)
    wk = expand(params["wk"])
    wv = expand(params["wv"])
    wq_swap = _swap_head_halves(wq, N_HEADS, hd)
    wk_swap = _swap_head_halves(wk, N_HEADS, hd)
    wqkv = jnp.concatenate([wq, wk, wq_swap, wk_swap, wv], axis=1).astype(jnp.bfloat16)   # (H, 5H)

    wgu = jnp.concatenate([params["wg"], params["wu"]], axis=1).astype(jnp.bfloat16)      # (H, 2I)
    wo = params["wo"].astype(jnp.bfloat16)
    wd = params["wd"].astype(jnp.bfloat16)

    # rotary tables: sign of rotate-half folded into sin, tiled per query head over the
    # packed [q | k] block and over the batch-folded token rows
    sin_signed = jnp.concatenate([-sin[:, :d2], sin[:, d2:]], axis=-1)    # (S, hd)
    cos_qk = jnp.tile(cos, (BATCH, 2 * N_HEADS)).astype(jnp.float32)      # (T, 2H)
    sin_qk = jnp.tile(sin_signed, (BATCH, 2 * N_HEADS)).astype(jnp.float32)

    # block-diagonal causal mask over the batch-folded token axis (additive, fp32)
    idx = jnp.arange(TOKENS)
    bi, pi = idx // SEQ, idx % SEQ
    allowed = (bi[:, None] == bi[None, :]) & (pi[None, :] <= pi[:, None])
    mask = jnp.where(allowed, 0.0, -1e9).astype(jnp.float32)              # (T, T)

    return {"wqkv": wqkv, "wo": wo, "wgu": wgu, "wd": wd,
            "ln1": params["ln1"], "ln2": params["ln2"],
            "cos_qk": cos_qk, "sin_qk": sin_qk, "mask": mask}


def llama_decoder_layer(x, prep):
    B, S, H = x.shape
    T = B * S
    x2 = x.reshape(T, H)                                     # fold batch into rows (contiguous view)

    full = lambda shape: pl.BlockSpec(shape, lambda i: tuple(0 for _ in shape))

    kernel = functools.partial(
        decoder_layer_kernel,
        n_heads=N_HEADS, head_dim=HEAD_DIM, hidden=H,
        intermediate=INTERMEDIATE, eps=RMS_EPS)

    out2 = pl.pallas_call(
        kernel,
        out_shape=jax.ShapeDtypeStruct((T, H), x.dtype),
        grid_spec=pltpu.PrefetchScalarGridSpec(
            num_scalar_prefetch=0,
            grid=(1,),                                       # single step: batch is folded into rows
            in_specs=[
                full((T, H)),                    # hidden_states, (B*S, H)
                full((T, 2 * H)),                # cos, tiled over [q | k]
                full((T, 2 * H)),                # sin (sign-folded), tiled over [q | k]
                full((T, T)),                    # block-diagonal causal mask
                full((1, H)),                    # input_layernorm.weight
                full((H, 5 * H)),                # fused [q | k | q_swap | k_swap | v] (bf16, q pre-scaled)
                full((H, H)),                    # o_proj (bf16)
                full((1, H)),                    # post_attention_layernorm.weight
                full((H, 2 * INTERMEDIATE)),     # fused gate|up (bf16)
                full((INTERMEDIATE, H)),         # down_proj (bf16)
            ],
            out_specs=full((T, H)),
        ),
        compiler_params=pltpu.CompilerParams(
            dimension_semantics=("arbitrary",)),
    )(x2, prep["cos_qk"], prep["sin_qk"], prep["mask"],
      prep["ln1"], prep["wqkv"], prep["wo"],
      prep["ln2"], prep["wgu"], prep["wd"])
    return out2.reshape(B, S, H)


# ----------------------------- pure-JAX fp32 reference (for validation) -----------------------------
def reference_layer(x, cos, sin, p):
    def rms(t, w):
        var = jnp.mean(t.astype(jnp.float32) ** 2, axis=-1, keepdims=True)
        return t * jax.lax.rsqrt(var + RMS_EPS) * w

    def rope(t):  # (B, S, nH, hd)
        d2 = HEAD_DIM // 2
        rot = jnp.concatenate([-t[..., d2:], t[..., :d2]], axis=-1)
        return t * cos[None, :, None, :] + rot * sin[None, :, None, :]

    B, S, H = x.shape
    h = rms(x, p["ln1"][0])
    q = (h @ p["wq"]).reshape(B, S, N_HEADS, HEAD_DIM)
    k = (h @ p["wk"]).reshape(B, S, N_KV_HEADS, HEAD_DIM)
    v = (h @ p["wv"]).reshape(B, S, N_KV_HEADS, HEAD_DIM)
    q, k = rope(q), rope(k)
    rep = N_HEADS // N_KV_HEADS
    k = jnp.repeat(k, rep, axis=2)
    v = jnp.repeat(v, rep, axis=2)
    scores = jnp.einsum("bqhd,bkhd->bhqk", q, k) / math.sqrt(HEAD_DIM)
    row = jnp.arange(S)[:, None]
    col = jnp.arange(S)[None, :]
    scores = scores + jnp.where(col <= row, 0.0, -1e9)
    probs = jax.nn.softmax(scores, axis=-1)
    attn = jnp.einsum("bhqk,bkhd->bqhd", probs, v).reshape(B, S, H)
    x = x + attn @ p["wo"]
    h2 = rms(x, p["ln2"][0])
    mlp = (jax.nn.silu(h2 @ p["wg"]) * (h2 @ p["wu"])) @ p["wd"]
    return x + mlp


# ----------------------------- driver -----------------------------
def make_params(key):
    ks = jax.random.split(key, 8)
    scale = 0.02
    n = lambda k, shape: (scale * jax.random.normal(k, shape)).astype(jnp.float32)
    return {
        "ln1": jnp.ones((1, HIDDEN), jnp.float32),
        "ln2": jnp.ones((1, HIDDEN), jnp.float32),
        "wq": n(ks[0], (HIDDEN, HIDDEN)),
        "wk": n(ks[1], (HIDDEN, KV_HIDDEN)),
        "wv": n(ks[2], (HIDDEN, KV_HIDDEN)),
        "wo": n(ks[3], (HIDDEN, HIDDEN)),
        "wg": n(ks[4], (HIDDEN, INTERMEDIATE)),
        "wu": n(ks[5], (HIDDEN, INTERMEDIATE)),
        "wd": n(ks[6], (INTERMEDIATE, HIDDEN)),
    }


def make_rope(seq, head_dim, theta):
    inv_freq = 1.0 / (theta ** (jnp.arange(0, head_dim, 2, dtype=jnp.float32) / head_dim))
    pos = jnp.arange(seq, dtype=jnp.float32)
    freqs = jnp.outer(pos, inv_freq)                        # (S, hd/2)
    emb = jnp.concatenate([freqs, freqs], axis=-1)          # (S, hd)
    return jnp.cos(emb), jnp.sin(emb)


if __name__ == "__main__":
    key = jax.random.PRNGKey(0)
    k_x, k_p = jax.random.split(key)
    x = jax.random.normal(k_x, (BATCH, SEQ, HIDDEN), dtype=jnp.float32)
    params = make_params(k_p)
    cos, sin = make_rope(SEQ, HEAD_DIM, ROPE_THETA)

    # one-time weight/rotary/mask prep (hoisted out of the per-forward path)
    prep = jax.tree_util.tree_map(jax.block_until_ready, prepare_layer(params, cos, sin))

    out = llama_decoder_layer(x, prep)
    out = jax.block_until_ready(out)

    ref = reference_layer(x, cos, sin, params)
    assert out.shape == (BATCH, SEQ, HIDDEN)
    assert bool(jnp.all(jnp.isfinite(out)))
    # kernel uses bf16 MXU operands (fp32 accumulation) -> compare against fp32 ref with bf16-level tol
    assert bool(jnp.allclose(out, ref, rtol=2e-2, atol=2e-2)), float(jnp.max(jnp.abs(out - ref)))

    print("KERNEL_OK")
</pallas_src>

<mosaic_0001>
module attributes {stable_mosaic.version = 11 : i64} {
  func.func @decoder_layer_kernel(%arg0: i32, %arg1: memref<16x128xf32, #tpu.memory_space<vmem>>, %arg2: memref<16x256xf32, #tpu.memory_space<vmem>>, %arg3: memref<16x256xf32, #tpu.memory_space<vmem>>, %arg4: memref<16x16xf32, #tpu.memory_space<vmem>>, %arg5: memref<1x128xf32, #tpu.memory_space<vmem>>, %arg6: memref<128x640xbf16, #tpu.memory_space<vmem>>, %arg7: memref<128x128xbf16, #tpu.memory_space<vmem>>, %arg8: memref<1x128xf32, #tpu.memory_space<vmem>>, %arg9: memref<128x512xbf16, #tpu.memory_space<vmem>>, %arg10: memref<256x128xbf16, #tpu.memory_space<vmem>>, %arg11: memref<16x128xf32, #tpu.memory_space<vmem>>) attributes {dimension_semantics = [#tpu.dimension_semantics<arbitrary>], iteration_bounds = array<i64: 1>, scalar_prefetch = 0 : i64, scratch_operands = 0 : i64, tpu.core_type = #tpu.core_type<tc>, window_params = [{pipeline_mode = #tpu.pipeline_mode<synchronous>, transform_indices = @transform_0, window_bounds = array<i64: 16, 128>}, {pipeline_mode = #tpu.pipeline_mode<synchronous>, transform_indices = @transform_1, window_bounds = array<i64: 16, 256>}, {pipeline_mode = #tpu.pipeline_mode<synchronous>, transform_indices = @transform_2, window_bounds = array<i64: 16, 256>}, {pipeline_mode = #tpu.pipeline_mode<synchronous>, transform_indices = @transform_3, window_bounds = array<i64: 16, 16>}, {pipeline_mode = #tpu.pipeline_mode<synchronous>, transform_indices = @transform_4, window_bounds = array<i64: 1, 128>}, {pipeline_mode = #tpu.pipeline_mode<synchronous>, transform_indices = @transform_5, window_bounds = array<i64: 128, 640>}, {pipeline_mode = #tpu.pipeline_mode<synchronous>, transform_indices = @transform_6, window_bounds = array<i64: 128, 128>}, {pipeline_mode = #tpu.pipeline_mode<synchronous>, transform_indices = @transform_7, window_bounds = array<i64: 1, 128>}, {pipeline_mode = #tpu.pipeline_mode<synchronous>, transform_indices = @transform_8, window_bounds = array<i64: 128, 512>}, {pipeline_mode = #tpu.pipeline_mode<synchronous>, transform_indices = @transform_9, window_bounds = array<i64: 256, 128>}, {pipeline_mode = #tpu.pipeline_mode<synchronous>, transform_indices = @transform_10, window_bounds = array<i64: 16, 128>}]} {
    %c0 = arith.constant 0 : index
    %c0_0 = arith.constant 0 : index
    %0 = vector.load %arg1[%c0, %c0_0] : memref<16x128xf32, #tpu.memory_space<vmem>>, vector<16x128xf32>
    %c0_1 = arith.constant 0 : index
    %c0_2 = arith.constant 0 : index
    %1 = vector.load %arg5[%c0_1, %c0_2] : memref<1x128xf32, #tpu.memory_space<vmem>>, vector<1x128xf32>
    %2 = arith.mulf %0, %0 : vector<16x128xf32>
    %cst = arith.constant dense<0.000000e+00> : vector<16xf32>
    %3 = vector.multi_reduction <add>, %2, %cst [1] : vector<16x128xf32> to vector<16xf32>
    %4 = vector.shape_cast %3 : vector<16xf32> to vector<16x1xf32>
    %cst_3 = arith.constant 1.280000e+02 : f32
    %5 = vector.broadcast %cst_3 : f32 to vector<16x1xf32>
    %6 = arith.divf %4, %5 : vector<16x1xf32>
    %cst_4 = arith.constant 9.99999997E-7 : f32
    %7 = vector.broadcast %cst_4 : f32 to vector<16x1xf32>
    %8 = arith.addf %6, %7 : vector<16x1xf32>
    %9 = math.rsqrt %8 : vector<16x1xf32>
    %10 = vector.broadcast %9 : vector<16x1xf32> to vector<16x128xf32>
    %11 = arith.mulf %0, %10 : vector<16x128xf32>
    %12 = vector.broadcast %1 : vector<1x128xf32> to vector<16x128xf32>
    %13 = arith.mulf %11, %12 : vector<16x128xf32>
    %14 = arith.truncf %13 : vector<16x128xf32> to vector<16x128xbf16>
    %c0_5 = arith.constant 0 : index
    %c0_6 = arith.constant 0 : index
    %15 = vector.load %arg6[%c0_5, %c0_6] : memref<128x640xbf16, #tpu.memory_space<vmem>>, vector<128x640xbf16>
    %cst_7 = arith.constant dense<0.000000e+00> : vector<16x640xf32>
    %16 = tpu.matmul %14, %15, %cst_7 {dimension_numbers = #tpu.dot_dimension_numbers<[1], [0], [0], [1], [0, 0, 1, 1], [], []>} : vector<16x128xbf16>, vector<128x640xbf16>, vector<16x640xf32> -> vector<16x640xf32>
    %17 = vector.extract_strided_slice %16 {offsets = [0, 0], sizes = [16, 256], strides = [1, 1]} : vector<16x640xf32> to vector<16x256xf32>
    %c0_8 = arith.constant 0 : index
    %c0_9 = arith.constant 0 : index
    %18 = vector.load %arg2[%c0_8, %c0_9] : memref<16x256xf32, #tpu.memory_space<vmem>>, vector<16x256xf32>
    %19 = arith.mulf %17, %18 : vector<16x256xf32>
    %20 = vector.extract_strided_slice %16 {offsets = [0, 256], sizes = [16, 256], strides = [1, 1]} : vector<16x640xf32> to vector<16x256xf32>
    %c0_10 = arith.constant 0 : index
    %c0_11 = arith.constant 0 : index
    %21 = vector.load %arg3[%c0_10, %c0_11] : memref<16x256xf32, #tpu.memory_space<vmem>>, vector<16x256xf32>
    %22 = arith.mulf %20, %21 : vector<16x256xf32>
    %23 = arith.addf %19, %22 : vector<16x256xf32>
    %24 = vector.extract_strided_slice %23 {offsets = [0, 0], sizes = [16, 128], strides = [1, 1]} : vector<16x256xf32> to vector<16x128xf32>
    %25 = arith.truncf %24 : vector<16x128xf32> to vector<16x128xbf16>
    %26 = vector.extract_strided_slice %23 {offsets = [0, 128], sizes = [16, 128], strides = [1, 1]} : vector<16x256xf32> to vector<16x128xf32>
    %27 = arith.truncf %26 : vector<16x128xf32> to vector<16x128xbf16>
    %28 = vector.extract_strided_slice %16 {offsets = [0, 512], sizes = [16, 128], strides = [1, 1]} : vector<16x640xf32> to vector<16x128xf32>
    %29 = arith.truncf %28 : vector<16x128xf32> to vector<16x128xbf16>
    %c0_12 = arith.constant 0 : index
    %c0_13 = arith.constant 0 : index
    %30 = vector.load %arg4[%c0_12, %c0_13] : memref<16x16xf32, #tpu.memory_space<vmem>>, vector<16x16xf32>
    %31 = vector.extract_strided_slice %25 {offsets = [0, 0], sizes = [16, 32], strides = [1, 1]} : vector<16x128xbf16> to vector<16x32xbf16>
    %32 = vector.extract_strided_slice %27 {offsets = [0, 0], sizes = [16, 32], strides = [1, 1]} : vector<16x128xbf16> to vector<16x32xbf16>
    %cst_14 = arith.constant dense<0.000000e+00> : vector<16x16xf32>
    %33 = tpu.matmul %31, %32, %cst_14 {dimension_numbers = #tpu.dot_dimension_numbers<[1], [1], [0], [0], [0, 0, 1, 0], [], []>} : vector<16x32xbf16>, vector<16x32xbf16>, vector<16x16xf32> -> vector<16x16xf32>
    %34 = arith.addf %33, %30 : vector<16x16xf32>
    %cst_15 = arith.constant dense<0xFF800000> : vector<16xf32>
    %35 = vector.multi_reduction <maximumf>, %34, %cst_15 [1] : vector<16x16xf32> to vector<16xf32>
    %36 = vector.shape_cast %35 : vector<16xf32> to vector<16x1xf32>
    %37 = vector.broadcast %36 : vector<16x1xf32> to vector<16x16xf32>
    %38 = arith.subf %34, %37 : vector<16x16xf32>
    %39 = math.exp %38 : vector<16x16xf32>
    %cst_16 = arith.constant dense<0.000000e+00> : vector<16xf32>
    %40 = vector.multi_reduction <add>, %39, %cst_16 [1] : vector<16x16xf32> to vector<16xf32>
    %41 = vector.shape_cast %40 : vector<16xf32> to vector<16x1xf32>
    %42 = tpu.reciprocal %41 {approx = true} : vector<16x1xf32> -> vector<16x1xf32>
    %43 = vector.broadcast %42 : vector<16x1xf32> to vector<16x16xf32>
    %44 = arith.mulf %39, %43 : vector<16x16xf32>
    %45 = arith.truncf %44 : vector<16x16xf32> to vector<16x16xbf16>
    %46 = vector.extract_strided_slice %29 {offsets = [0, 0], sizes = [16, 32], strides = [1, 1]} : vector<16x128xbf16> to vector<16x32xbf16>
    %cst_17 = arith.constant dense<0.000000e+00> : vector<16x32xf32>
    %47 = tpu.matmul %45, %46, %cst_17 {dimension_numbers = #tpu.dot_dimension_numbers<[1], [0], [0], [1], [0, 0, 1, 1], [], []>} : vector<16x16xbf16>, vector<16x32xbf16>, vector<16x32xf32> -> vector<16x32xf32>
    %48 = vector.extract_strided_slice %25 {offsets = [0, 32], sizes = [16, 32], strides = [1, 1]} : vector<16x128xbf16> to vector<16x32xbf16>
    %49 = vector.extract_strided_slice %27 {offsets = [0, 32], sizes = [16, 32], strides = [1, 1]} : vector<16x128xbf16> to vector<16x32xbf16>
    %cst_18 = arith.constant dense<0.000000e+00> : vector<16x16xf32>
    %50 = tpu.matmul %48, %49, %cst_18 {dimension_numbers = #tpu.dot_dimension_numbers<[1], [1], [0], [0], [0, 0, 1, 0], [], []>} : vector<16x32xbf16>, vector<16x32xbf16>, vector<16x16xf32> -> vector<16x16xf32>
    %51 = arith.addf %50, %30 : vector<16x16xf32>
    %cst_19 = arith.constant dense<0xFF800000> : vector<16xf32>
    %52 = vector.multi_reduction <maximumf>, %51, %cst_19 [1] : vector<16x16xf32> to vector<16xf32>
    %53 = vector.shape_cast %52 : vector<16xf32> to vector<16x1xf32>
    %54 = vector.broadcast %53 : vector<16x1xf32> to vector<16x16xf32>
    %55 = arith.subf %51, %54 : vector<16x16xf32>
    %56 = math.exp %55 : vector<16x16xf32>
    %cst_20 = arith.constant dense<0.000000e+00> : vector<16xf32>
    %57 = vector.multi_reduction <add>, %56, %cst_20 [1] : vector<16x16xf32> to vector<16xf32>
    %58 = vector.shape_cast %57 : vector<16xf32> to vector<16x1xf32>
    %59 = tpu.reciprocal %58 {approx = true} : vector<16x1xf32> -> vector<16x1xf32>
    %60 = vector.broadcast %59 : vector<16x1xf32> to vector<16x16xf32>
    %61 = arith.mulf %56, %60 : vector<16x16xf32>
    %62 = arith.truncf %61 : vector<16x16xf32> to vector<16x16xbf16>
    %63 = vector.extract_strided_slice %29 {offsets = [0, 32], sizes = [16, 32], strides = [1, 1]} : vector<16x128xbf16> to vector<16x32xbf16>
    %cst_21 = arith.constant dense<0.000000e+00> : vector<16x32xf32>
    %64 = tpu.matmul %62, %63, %cst_21 {dimension_numbers = #tpu.dot_dimension_numbers<[1], [0], [0], [1], [0, 0, 1, 1], [], []>} : vector<16x16xbf16>, vector<16x32xbf16>, vector<16x32xf32> -> vector<16x32xf32>
    %65 = vector.extract_strided_slice %25 {offsets = [0, 64], sizes = [16, 32], strides = [1, 1]} : vector<16x128xbf16> to vector<16x32xbf16>
    %66 = vector.extract_strided_slice %27 {offsets = [0, 64], sizes = [16, 32], strides = [1, 1]} : vector<16x128xbf16> to vector<16x32xbf16>
    %cst_22 = arith.constant dense<0.000000e+00> : vector<16x16xf32>
    %67 = tpu.matmul %65, %66, %cst_22 {dimension_numbers = #tpu.dot_dimension_numbers<[1], [1], [0], [0], [0, 0, 1, 0], [], []>} : vector<16x32xbf16>, vector<16x32xbf16>, vector<16x16xf32> -> vector<16x16xf32>
    %68 = arith.addf %67, %30 : vector<16x16xf32>
    %cst_23 = arith.constant dense<0xFF800000> : vector<16xf32>
    %69 = vector.multi_reduction <maximumf>, %68, %cst_23 [1] : vector<16x16xf32> to vector<16xf32>
    %70 = vector.shape_cast %69 : vector<16xf32> to vector<16x1xf32>
    %71 = vector.broadcast %70 : vector<16x1xf32> to vector<16x16xf32>
    %72 = arith.subf %68, %71 : vector<16x16xf32>
    %73 = math.exp %72 : vector<16x16xf32>
    %cst_24 = arith.constant dense<0.000000e+00> : vector<16xf32>
    %74 = vector.multi_reduction <add>, %73, %cst_24 [1] : vector<16x16xf32> to vector<16xf32>
    %75 = vector.shape_cast %74 : vector<16xf32> to vector<16x1xf32>
    %76 = tpu.reciprocal %75 {approx = true} : vector<16x1xf32> -> vector<16x1xf32>
    %77 = vector.broadcast %76 : vector<16x1xf32> to vector<16x16xf32>
    %78 = arith.mulf %73, %77 : vector<16x16xf32>
    %79 = arith.truncf %78 : vector<16x16xf32> to vector<16x16xbf16>
    %80 = vector.extract_strided_slice %29 {offsets = [0, 64], sizes = [16, 32], strides = [1, 1]} : vector<16x128xbf16> to vector<16x32xbf16>
    %cst_25 = arith.constant dense<0.000000e+00> : vector<16x32xf32>
    %81 = tpu.matmul %79, %80, %cst_25 {dimension_numbers = #tpu.dot_dimension_numbers<[1], [0], [0], [1], [0, 0, 1, 1], [], []>} : vector<16x16xbf16>, vector<16x32xbf16>, vector<16x32xf32> -> vector<16x32xf32>
    %82 = vector.extract_strided_slice %25 {offsets = [0, 96], sizes = [16, 32], strides = [1, 1]} : vector<16x128xbf16> to vector<16x32xbf16>
    %83 = vector.extract_strided_slice %27 {offsets = [0, 96], sizes = [16, 32], strides = [1, 1]} : vector<16x128xbf16> to vector<16x32xbf16>
    %cst_26 = arith.constant dense<0.000000e+00> : vector<16x16xf32>
    %84 = tpu.matmul %82, %83, %cst_26 {dimension_numbers = #tpu.dot_dimension_numbers<[1], [1], [0], [0], [0, 0, 1, 0], [], []>} : vector<16x32xbf16>, vector<16x32xbf16>, vector<16x16xf32> -> vector<16x16xf32>
    %85 = arith.addf %84, %30 : vector<16x16xf32>
    %cst_27 = arith.constant dense<0xFF800000> : vector<16xf32>
    %86 = vector.multi_reduction <maximumf>, %85, %cst_27 [1] : vector<16x16xf32> to vector<16xf32>
    %87 = vector.shape_cast %86 : vector<16xf32> to vector<16x1xf32>
    %88 = vector.broadcast %87 : vector<16x1xf32> to vector<16x16xf32>
    %89 = arith.subf %85, %88 : vector<16x16xf32>
    %90 = math.exp %89 : vector<16x16xf32>
    %cst_28 = arith.constant dense<0.000000e+00> : vector<16xf32>
    %91 = vector.multi_reduction <add>, %90, %cst_28 [1] : vector<16x16xf32> to vector<16xf32>
    %92 = vector.shape_cast %91 : vector<16xf32> to vector<16x1xf32>
    %93 = tpu.reciprocal %92 {approx = true} : vector<16x1xf32> -> vector<16x1xf32>
    %94 = vector.broadcast %93 : vector<16x1xf32> to vector<16x16xf32>
    %95 = arith.mulf %90, %94 : vector<16x16xf32>
    %96 = arith.truncf %95 : vector<16x16xf32> to vector<16x16xbf16>
    %97 = vector.extract_strided_slice %29 {offsets = [0, 96], sizes = [16, 32], strides = [1, 1]} : vector<16x128xbf16> to vector<16x32xbf16>
    %cst_29 = arith.constant dense<0.000000e+00> : vector<16x32xf32>
    %98 = tpu.matmul %96, %97, %cst_29 {dimension_numbers = #tpu.dot_dimension_numbers<[1], [0], [0], [1], [0, 0, 1, 1], [], []>} : vector<16x16xbf16>, vector<16x32xbf16>, vector<16x32xf32> -> vector<16x32xf32>
    %99 = tpu.concatenate %47, %64, %81, %98 in 1 : vector<16x32xf32>, vector<16x32xf32>, vector<16x32xf32>, vector<16x32xf32> -> vector<16x128xf32>
    %100 = arith.truncf %99 : vector<16x128xf32> to vector<16x128xbf16>
    %c0_30 = arith.constant 0 : index
    %c0_31 = arith.constant 0 : index
    %101 = vector.load %arg7[%c0_30, %c0_31] : memref<128x128xbf16, #tpu.memory_space<vmem>>, vector<128x128xbf16>
    %cst_32 = arith.constant dense<0.000000e+00> : vector<16x128xf32>
    %102 = tpu.matmul %100, %101, %cst_32 {dimension_numbers = #tpu.dot_dimension_numbers<[1], [0], [0], [1], [0, 0, 1, 1], [], []>} : vector<16x128xbf16>, vector<128x128xbf16>, vector<16x128xf32> -> vector<16x128xf32>
    %103 = arith.addf %0, %102 : vector<16x128xf32>
    %c0_33 = arith.constant 0 : index
    %c0_34 = arith.constant 0 : index
    %104 = vector.load %arg8[%c0_33, %c0_34] : memref<1x128xf32, #tpu.memory_space<vmem>>, vector<1x128xf32>
    %105 = arith.mulf %103, %103 : vector<16x128xf32>
    %cst_35 = arith.constant dense<0.000000e+00> : vector<16xf32>
    %106 = vector.multi_reduction <add>, %105, %cst_35 [1] : vector<16x128xf32> to vector<16xf32>
    %107 = vector.shape_cast %106 : vector<16xf32> to vector<16x1xf32>
    %cst_36 = arith.constant 1.280000e+02 : f32
    %108 = vector.broadcast %cst_36 : f32 to vector<16x1xf32>
    %109 = arith.divf %107, %108 : vector<16x1xf32>
    %cst_37 = arith.constant 9.99999997E-7 : f32
    %110 = vector.broadcast %cst_37 : f32 to vector<16x1xf32>
    %111 = arith.addf %109, %110 : vector<16x1xf32>
    %112 = math.rsqrt %111 : vector<16x1xf32>
    %113 = vector.broadcast %112 : vector<16x1xf32> to vector<16x128xf32>
    %114 = arith.mulf %103, %113 : vector<16x128xf32>
    %115 = vector.broadcast %104 : vector<1x128xf32> to vector<16x128xf32>
    %116 = arith.mulf %114, %115 : vector<16x128xf32>
    %117 = arith.truncf %116 : vector<16x128xf32> to vector<16x128xbf16>
    %c0_38 = arith.constant 0 : index
    %c0_39 = arith.constant 0 : index
    %118 = vector.load %arg9[%c0_38, %c0_39] : memref<128x512xbf16, #tpu.memory_space<vmem>>, vector<128x512xbf16>
    %cst_40 = arith.constant dense<0.000000e+00> : vector<16x512xf32>
    %119 = tpu.matmul %117, %118, %cst_40 {dimension_numbers = #tpu.dot_dimension_numbers<[1], [0], [0], [1], [0, 0, 1, 1], [], []>} : vector<16x128xbf16>, vector<128x512xbf16>, vector<16x512xf32> -> vector<16x512xf32>
    %120 = vector.extract_strided_slice %119 {offsets = [0, 0], sizes = [16, 256], strides = [1, 1]} : vector<16x512xf32> to vector<16x256xf32>
    %121 = arith.negf %120 : vector<16x256xf32>
    %122 = math.exp %121 : vector<16x256xf32>
    %cst_41 = arith.constant 1.000000e+00 : f32
    %123 = vector.broadcast %cst_41 : f32 to vector<16x256xf32>
    %124 = arith.addf %123, %122 : vector<16x256xf32>
    %125 = arith.divf %123, %124 : vector<16x256xf32>
    %126 = arith.mulf %120, %125 : vector<16x256xf32>
    %127 = vector.extract_strided_slice %119 {offsets = [0, 256], sizes = [16, 256], strides = [1, 1]} : vector<16x512xf32> to vector<16x256xf32>
    %128 = arith.mulf %126, %127 : vector<16x256xf32>
    %129 = arith.truncf %128 : vector<16x256xf32> to vector<16x256xbf16>
    %c0_42 = arith.constant 0 : index
    %c0_43 = arith.constant 0 : index
    %130 = vector.load %arg10[%c0_42, %c0_43] : memref<256x128xbf16, #tpu.memory_space<vmem>>, vector<256x128xbf16>
    %cst_44 = arith.constant dense<0.000000e+00> : vector<16x128xf32>
    %131 = tpu.matmul %129, %130, %cst_44 {dimension_numbers = #tpu.dot_dimension_numbers<[1], [0], [0], [1], [0, 0, 1, 1], [], []>} : vector<16x256xbf16>, vector<256x128xbf16>, vector<16x128xf32> -> vector<16x128xf32>
    %132 = arith.addf %103, %131 : vector<16x128xf32>
    %c0_45 = arith.constant 0 : index
    %c0_46 = arith.constant 0 : index
    %133 = vector.load %arg11[%c0_45, %c0_46] : memref<16x128xf32, #tpu.memory_space<vmem>>, vector<16x128xf32>
    tpu.vector_store %arg11[%c0_45, %c0_46], %132 {strides = array<i32>} : memref<16x128xf32, #tpu.memory_space<vmem>>, vector<16x128xf32>,
    return
  }
  func.func @transform_0(%arg0: i32) -> (i32, i32) {
    %c0_i32 = arith.constant 0 : i32
    %c0_i32_0 = arith.constant 0 : i32
    %c0_i32_1 = arith.constant 0 : i32
    return %c0_i32, %c0_i32_0 : i32, i32
  }
  func.func @transform_1(%arg0: i32) -> (i32, i32) {
    %c0_i32 = arith.constant 0 : i32
    %c0_i32_0 = arith.constant 0 : i32
    %c0_i32_1 = arith.constant 0 : i32
    return %c0_i32, %c0_i32_0 : i32, i32
  }
  func.func @transform_2(%arg0: i32) -> (i32, i32) {
    %c0_i32 = arith.constant 0 : i32
    %c0_i32_0 = arith.constant 0 : i32
    %c0_i32_1 = arith.constant 0 : i32
    return %c0_i32, %c0_i32_0 : i32, i32
  }
  func.func @transform_3(%arg0: i32) -> (i32, i32) {
    %c0_i32 = arith.constant 0 : i32
    %c0_i32_0 = arith.constant 0 : i32
    %c0_i32_1 = arith.constant 0 : i32
    return %c0_i32, %c0_i32_0 : i32, i32
  }
  func.func @transform_4(%arg0: i32) -> (i32, i32) {
    %c0_i32 = arith.constant 0 : i32
    %c0_i32_0 = arith.constant 0 : i32
    %c0_i32_1 = arith.constant 0 : i32
    return %c0_i32, %c0_i32_0 : i32, i32
  }
  func.func @transform_5(%arg0: i32) -> (i32, i32) {
    %c0_i32 = arith.constant 0 : i32
    %c0_i32_0 = arith.constant 0 : i32
    %c0_i32_1 = arith.constant 0 : i32
    return %c0_i32, %c0_i32_0 : i32, i32
  }
  func.func @transform_6(%arg0: i32) -> (i32, i32) {
    %c0_i32 = arith.constant 0 : i32
    %c0_i32_0 = arith.constant 0 : i32
    %c0_i32_1 = arith.constant 0 : i32
    return %c0_i32, %c0_i32_0 : i32, i32
  }
  func.func @transform_7(%arg0: i32) -> (i32, i32) {
    %c0_i32 = arith.constant 0 : i32
    %c0_i32_0 = arith.constant 0 : i32
    %c0_i32_1 = arith.constant 0 : i32
    return %c0_i32, %c0_i32_0 : i32, i32
  }
  func.func @transform_8(%arg0: i32) -> (i32, i32) {
    %c0_i32 = arith.constant 0 : i32
    %c0_i32_0 = arith.constant 0 : i32
    %c0_i32_1 = arith.constant 0 : i32
    return %c0_i32, %c0_i32_0 : i32, i32
  }
  func.func @transform_9(%arg0: i32) -> (i32, i32) {
    %c0_i32 = arith.constant 0 : i32
    %c0_i32_0 = arith.constant 0 : i32
    %c0_i32_1 = arith.constant 0 : i32
    return %c0_i32, %c0_i32_0 : i32, i32
  }
  func.func @transform_10(%arg0: i32) -> (i32, i32) {
    %c0_i32 = arith.constant 0 : i32
    %c0_i32_0 = arith.constant 0 : i32
    %c0_i32_1 = arith.constant 0 : i32
    return %c0_i32, %c0_i32_0 : i32, i32
  }
}

</mosaic_0001>

<llo_original>
// kernel: tpu_custom_call.1
$region0: #{tpu_custom_call.1}
  #allocation0 [shape = 'u32[]', space=smem, size = 0x4, offset = 0x4, fixed_abs, tag = 'smem constant byte address 0x4 - core index']
  #allocation1 [shape = 'u32[72,128]{1,0:T(1,128)}', space=vmem, size = 0x9000, scoped, tag = 'internal scratch']
  %s0 = inlined_call_operand.hbm [shape: f32[16,128], index: 0, kind: input, shape index: {}]
  %s1 = inlined_call_operand.hbm [shape: f32[16,256], index: 1, kind: input, shape index: {}]
  %s2 = inlined_call_operand.hbm [shape: f32[16,256], index: 2, kind: input, shape index: {}]
  %s3 = inlined_call_operand.hbm [shape: f32[16,16], index: 3, kind: input, shape index: {}]
  %s4 = inlined_call_operand.vmem [shape: f32[1,128], index: 4, kind: input, shape index: {}]
  %s5 = inlined_call_operand.hbm [shape: bf16[128,640], index: 5, kind: input, shape index: {}]
  %s6 = inlined_call_operand.hbm [shape: bf16[128,128], index: 6, kind: input, shape index: {}]
  %s7 = inlined_call_operand.vmem [shape: f32[1,128], index: 7, kind: input, shape index: {}]
  %s8 = inlined_call_operand.hbm [shape: bf16[128,512], index: 8, kind: input, shape index: {}]
  %s9 = inlined_call_operand.hbm [shape: bf16[256,128], index: 9, kind: input, shape index: {}]
  %s10 = inlined_call_operand.hbm [shape: f32[16,128], index: 10, kind: output, shape index: {}]
  %s11 = sld [smem:[#allocation0]]
  $region82: #{tpu_custom_call.1} parent=0
    _
  %s13 = ssub.s32 1, %s11
  %s14 = scalar_select 0, %s13, %s11
  $region1: #{tpu_custom_call.1} parent=0
    #allocation2 [shape = 'u8[8192]{0}', space=vmem, size = 0x2000, scoped, tag = 'input window, operand 0, single buffered']
    #allocation3 [shape = 's32[1]{0}', space=sflag, size = 0x4, scoped, tag = 'scoped memory for tpu_custom_call.1']
    #allocation4 [shape = 's32[1]{0}', space=sflag, size = 0x4, scoped, tag = 'scoped memory for tpu_custom_call.1']
    #allocation5 [shape = 'u8[16384]{0}', space=vmem, size = 0x4000, scoped, tag = 'input window, operand 1, single buffered']
    #allocation6 [shape = 's32[1]{0}', space=sflag, size = 0x4, scoped, tag = 'scoped memory for tpu_custom_call.1']
    #allocation7 [shape = 'u8[16384]{0}', space=vmem, size = 0x4000, scoped, tag = 'input window, operand 2, single buffered']
    #allocation8 [shape = 'u8[8192]{0}', space=vmem, size = 0x2000, scoped, tag = 'input window, operand 3, single buffered']
    #allocation9 [shape = 's32[1]{0}', space=sflag, size = 0x4, scoped, tag = 'scoped memory for tpu_custom_call.1']
    #allocation10 [shape = 'u8[163840]{0}', space=vmem, size = 0x28000, scoped, tag = 'input window, operand 5, single buffered']
    #allocation11 [shape = 'u8[32768]{0}', space=vmem, size = 0x8000, scoped, tag = 'input window, operand 6, single buffered']
    #allocation12 [shape = 's32[1]{0}', space=sflag, size = 0x4, scoped, tag = 'scoped memory for tpu_custom_call.1']
    #allocation13 [shape = 'u8[131072]{0}', space=vmem, size = 0x20000, scoped, tag = 'input window, operand 8, single buffered']
    #allocation14 [shape = 'u8[65536]{0}', space=vmem, size = 0x10000, scoped, tag = 'input window, operand 9, single buffered']
    #allocation15 [shape = 's32[1]{0}', space=sflag, size = 0x4, scoped, tag = 'scoped memory for tpu_custom_call.1']
    #allocation16 [shape = 'u8[8192]{0}', space=vmem, size = 0x2000, scoped, tag = 'output window, operand 0, single buffered']
    %15 = vsyncpa [#allocation3], 0
    %16 = vsyncpa [#allocation6], 0
    %17 = vsyncpa [#allocation9], 0
    %18 = vsyncpa [#allocation12], 0
    %19 = vsyncpa [#allocation15], 0
    %20 = vsyncpa [#allocation4], 0
    // Predicated region
    $region2: #{tpu_custom_call.1} parent=1 // pred_check
      _
    $region3: #{tpu_custom_call.1} parent=1 // pred_check_branch
      %22 = sbr.rel (0) target = $region5
    $region4: #{tpu_custom_call.1} parent=1 // pred_region
      %24 = vsyncadd [#allocation3], 0
      %s25 = sshll.u32 %s0, 4
      %s26 = int_to_ptr.hbm [resolvable:$true] %s25
      %s27 = sshll.u32 [#allocation2], 4
      %s28 = int_to_ptr.vmem [resolvable:$true] %s27
      %33 = dma.hbm_to_vmem [thread:$0]  %s26, 256, %s28, [#allocation3], 128, 128, 8
    $region5: #{tpu_custom_call.1} parent=1 // pred_fallthru
      _
    // Predicated region
    $region6: #{tpu_custom_call.1} parent=1 // pred_check
      _
    $region7: #{tpu_custom_call.1} parent=1 // pred_check_branch
      %35 = sbr.rel (0) target = $region9
    $region8: #{tpu_custom_call.1} parent=1 // pred_region
      %37 = vsyncadd [#allocation6], 0
      %s38 = sshll.u32 %s1, 4
      %s39 = int_to_ptr.hbm [resolvable:$true] %s38
      %s40 = sshll.u32 [#allocation5], 4
      %s41 = int_to_ptr.vmem [resolvable:$true] %s40
      %46 = dma.hbm_to_vmem [thread:$0]  %s39, 512, %s41, [#allocation6], 256, 256, 16
    $region9: #{tpu_custom_call.1} parent=1 // pred_fallthru
      _
    // Predicated region
    $region10: #{tpu_custom_call.1} parent=1 // pred_check
      _
    $region11: #{tpu_custom_call.1} parent=1 // pred_check_branch
      %48 = sbr.rel (0) target = $region13
    $region12: #{tpu_custom_call.1} parent=1 // pred_region
      %50 = vsyncadd [#allocation6], 0
      %s51 = sshll.u32 %s2, 4
      %s52 = int_to_ptr.hbm [resolvable:$true] %s51
      %s53 = sshll.u32 [#allocation7], 4
      %s54 = int_to_ptr.vmem [resolvable:$true] %s53
      %59 = dma.hbm_to_vmem [thread:$0]  %s52, 512, %s54, [#allocation6], 256, 256, 16
    $region13: #{tpu_custom_call.1} parent=1 // pred_fallthru
      _
    // Predicated region
    $region14: #{tpu_custom_call.1} parent=1 // pred_check
      _
    $region15: #{tpu_custom_call.1} parent=1 // pred_check_branch
      %61 = sbr.rel (0) target = $region17
    $region16: #{tpu_custom_call.1} parent=1 // pred_region
      %63 = vsyncadd [#allocation9], 0
      %s64 = sshll.u32 %s3, 4
      %s65 = int_to_ptr.hbm [resolvable:$true] %s64
      %s66 = sshll.u32 [#allocation8], 4
      %s67 = int_to_ptr.vmem [resolvable:$true] %s66
      %72 = dma.hbm_to_vmem [thread:$0]  %s65, 256, %s67, [#allocation9], 128, 128, 8
    $region17: #{tpu_custom_call.1} parent=1 // pred_fallthru
      _
    // Predicated region
    $region18: #{tpu_custom_call.1} parent=1 // pred_check
      _
    $region19: #{tpu_custom_call.1} parent=1 // pred_check_branch
      %74 = sbr.rel (0) target = $region21
    $region20: #{tpu_custom_call.1} parent=1 // pred_region
      _
    $region21: #{tpu_custom_call.1} parent=1 // pred_fallthru
      _
    // Predicated region
    $region22: #{tpu_custom_call.1} parent=1 // pred_check
      _
    $region23: #{tpu_custom_call.1} parent=1 // pred_check_branch
      %76 = sbr.rel (0) target = $region25
    $region24: #{tpu_custom_call.1} parent=1 // pred_region
      %78 = vsyncadd [#allocation9], 0
      %s79 = sshll.u32 %s5, 4
      %s80 = int_to_ptr.hbm [resolvable:$true] %s79
      %s81 = sshll.u32 [#allocation10], 4
      %s82 = int_to_ptr.vmem [resolvable:$true] %s81
      %87 = dma.hbm_to_vmem [thread:$0]  %s80, 5120, %s82, [#allocation9], 320, 320, 20
    $region25: #{tpu_custom_call.1} parent=1 // pred_fallthru
      _
    // Predicated region
    $region26: #{tpu_custom_call.1} parent=1 // pred_check
      _
    $region27: #{tpu_custom_call.1} parent=1 // pred_check_branch
      %89 = sbr.rel (0) target = $region29
    $region28: #{tpu_custom_call.1} parent=1 // pred_region
      %91 = vsyncadd [#allocation12], 0
      %s92 = sshll.u32 %s6, 4
      %s93 = int_to_ptr.hbm [resolvable:$true] %s92
      %s94 = sshll.u32 [#allocation11], 4
      %s95 = int_to_ptr.vmem [resolvable:$true] %s94
      %100 = dma.hbm_to_vmem [thread:$0]  %s93, 1024, %s95, [#allocation12], 64, 64, 4
    $region29: #{tpu_custom_call.1} parent=1 // pred_fallthru
      _
    // Predicated region
    $region30: #{tpu_custom_call.1} parent=1 // pred_check
      _
    $region31: #{tpu_custom_call.1} parent=1 // pred_check_branch
      %102 = sbr.rel (0) target = $region33
    $region32: #{tpu_custom_call.1} parent=1 // pred_region
      _
    $region33: #{tpu_custom_call.1} parent=1 // pred_fallthru
      _
    // Predicated region
    $region34: #{tpu_custom_call.1} parent=1 // pred_check
      _
    $region35: #{tpu_custom_call.1} parent=1 // pred_check_branch
      %104 = sbr.rel (0) target = $region37
    $region36: #{tpu_custom_call.1} parent=1 // pred_region
      %106 = vsyncadd [#allocation12], 0
      %s107 = sshll.u32 %s8, 4
      %s108 = int_to_ptr.hbm [resolvable:$true] %s107
      %s109 = sshll.u32 [#allocation13], 4
      %s110 = int_to_ptr.vmem [resolvable:$true] %s109
      %115 = dma.hbm_to_vmem [thread:$0]  %s108, 4096, %s110, [#allocation12], 256, 256, 16
    $region37: #{tpu_custom_call.1} parent=1 // pred_fallthru
      _
    // Predicated region
    $region38: #{tpu_custom_call.1} parent=1 // pred_check
      _
    $region39: #{tpu_custom_call.1} parent=1 // pred_check_branch
      %117 = sbr.rel (0) target = $region41
    $region40: #{tpu_custom_call.1} parent=1 // pred_region
      %119 = vsyncadd [#allocation15], 0
      %s120 = sshll.u32 %s9, 4
      %s121 = int_to_ptr.hbm [resolvable:$true] %s120
      %s122 = sshll.u32 [#allocation14], 4
      %s123 = int_to_ptr.vmem [resolvable:$true] %s122
      %128 = dma.hbm_to_vmem [thread:$0]  %s121, 2048, %s123, [#allocation15], 64, 64, 4
    $region41: #{tpu_custom_call.1} parent=1 // pred_fallthru
      _
    // Predicated region
    $region42: #{tpu_custom_call.1} parent=1 // pred_check
      _
    $region43: #{tpu_custom_call.1} parent=1 // pred_check_branch
      %130 = sbr.rel (0) target = $region45
    $region44: #{tpu_custom_call.1} parent=1 // pred_region
      %132 = dma.done [#allocation3], 256
    $region45: #{tpu_custom_call.1} parent=1 // pred_fallthru
      _
    // Predicated region
    $region46: #{tpu_custom_call.1} parent=1 // pred_check
      _
    $region47: #{tpu_custom_call.1} parent=1 // pred_check_branch
      %134 = sbr.rel (0) target = $region49
    $region48: #{tpu_custom_call.1} parent=1 // pred_region
      %136 = dma.done [#allocation6], 512
    $region49: #{tpu_custom_call.1} parent=1 // pred_fallthru
      _
    // Predicated region
    $region50: #{tpu_custom_call.1} parent=1 // pred_check
      _
    $region51: #{tpu_custom_call.1} parent=1 // pred_check_branch
      %138 = sbr.rel (0) target = $region53
    $region52: #{tpu_custom_call.1} parent=1 // pred_region
      %140 = dma.done [#allocation6], 512
    $region53: #{tpu_custom_call.1} parent=1 // pred_fallthru
      _
    // Predicated region
    $region54: #{tpu_custom_call.1} parent=1 // pred_check
      _
    $region55: #{tpu_custom_call.1} parent=1 // pred_check_branch
      %142 = sbr.rel (0) target = $region57
    $region56: #{tpu_custom_call.1} parent=1 // pred_region
      %144 = dma.done [#allocation9], 256
    $region57: #{tpu_custom_call.1} parent=1 // pred_fallthru
      _
    // Predicated region
    $region58: #{tpu_custom_call.1} parent=1 // pred_check
      _
    $region59: #{tpu_custom_call.1} parent=1 // pred_check_branch
      %146 = sbr.rel (0) target = $region61
    $region60: #{tpu_custom_call.1} parent=1 // pred_region
      %148 = dma.done [#allocation9], 5120
    $region61: #{tpu_custom_call.1} parent=1 // pred_fallthru
      _
    // Predicated region
    $region62: #{tpu_custom_call.1} parent=1 // pred_check
      _
    $region63: #{tpu_custom_call.1} parent=1 // pred_check_branch
      %150 = sbr.rel (0) target = $region65
    $region64: #{tpu_custom_call.1} parent=1 // pred_region
      %152 = dma.done [#allocation12], 1024
    $region65: #{tpu_custom_call.1} parent=1 // pred_fallthru
      _
    // Predicated region
    $region66: #{tpu_custom_call.1} parent=1 // pred_check
      _
    $region67: #{tpu_custom_call.1} parent=1 // pred_check_branch
      %154 = sbr.rel (0) target = $region69
    $region68: #{tpu_custom_call.1} parent=1 // pred_region
      %156 = dma.done [#allocation12], 4096
    $region69: #{tpu_custom_call.1} parent=1 // pred_fallthru
      _
    // Predicated region
    $region70: #{tpu_custom_call.1} parent=1 // pred_check
      _
    $region71: #{tpu_custom_call.1} parent=1 // pred_check_branch
      %158 = sbr.rel (0) target = $region73
    $region72: #{tpu_custom_call.1} parent=1 // pred_region
      %160 = dma.done [#allocation15], 2048
    $region73: #{tpu_custom_call.1} parent=1 // pred_fallthru
      _
    %v162 = vld [vmem:[#allocation2] sm:$0xff]
    %v163 = vld [vmem:[#allocation2 + $0x8] sm:$0xff]
    %v164 = vld [vmem:[%s4] sm:$0x1]
    %v165 = vmul.f32 %v162, %v162
    %v166 = vmul.f32 %v163, %v163
    %167 = vadd.xlane.f32.xlu0 %v165
    %v168 = vpop.xlane.xlu0 %167
    %169 = vadd.xlane.f32.xlu0 %v166
    %v170 = vpop.xlane.xlu0 %169
    %v171 = vrcp.pop 128.0
    %v172 = vmul.f32 128.0, %v171
    %v173 = vsub.f32 1.0, %v172
    %v174 = vmul.f32 %v171, %v173
    %v175 = vadd.f32 %v171, %v174
    %vm176 = vweird.f32 %v171
    %v177 = vsel %vm176, %v171, %v175
    %v178 = vmul.f32 %v168, %v177
    %v179 = vmul.f32 %v170, %v177
    %v180 = vadd.f32 %v178, 1e-06
    %v181 = vadd.f32 %v179, 1e-06
    %v182 = vrsqrt.pop %v180
    %v183 = vmul.f32 %v182, %v180
    %v184 = vmul.f32 %v183, %v182
    %v185 = vmul.f32 0.5, %v184
    %v186 = vsub.f32 1.5, %v185
    %v187 = vmul.f32 %v182, %v186
    %vm188 = vweird.f32 %v180
    %vm189 = vweird.f32 %v182
    %vm190 = vmor %vm188, %vm189
    %v191 = vsel %vm190, %v182, %v187
    %v192 = vrsqrt.pop %v181
    %v193 = vmul.f32 %v192, %v181
    %v194 = vmul.f32 %v193, %v192
    %v195 = vmul.f32 0.5, %v194
    %v196 = vsub.f32 1.5, %v195
    %v197 = vmul.f32 %v192, %v196
    %vm198 = vweird.f32 %v181
    %vm199 = vweird.f32 %v192
    %vm200 = vmor %vm198, %vm199
    %v201 = vsel %vm200, %v192, %v197
    %v202 = vmul.f32 %v162, %v191
    %v203 = vmul.f32 %v163, %v201
    %v205 = vperm.slane %v164, 0
    %v207 = vmul.f32 %v202, %v205
    %v208 = vmul.f32 %v203, %v205
    %v209 = vpack.c.bf16 %v208, %v207
    %v210 = vld [vmem:[#allocation10] sm:$0xff]
    %v211 = vld [vmem:[#allocation10 + $0x8] sm:$0xff]
    %v212 = vld [vmem:[#allocation10 + $0x10] sm:$0xf]
    %v213 = vld [vmem:[#allocation10 + $0x14] sm:$0xff]
    %v214 = vld [vmem:[#allocation10 + $0x1c] sm:$0xff]
    %v215 = vld [vmem:[#allocation10 + $0x24] sm:$0xf]
    %v216 = vld [vmem:[#allocation10 + $0x28] sm:$0xff]
    %v217 = vld [vmem:[#allocation10 + $0x30] sm:$0xff]
    %v218 = vld [vmem:[#allocation10 + $0x38] sm:$0xf]
    %v219 = vld [vmem:[#allocation10 + $0x3c] sm:$0xff]
    %v220 = vld [vmem:[#allocation10 + $0x44] sm:$0xff]
    %v221 = vld [vmem:[#allocation10 + $0x4c] sm:$0xf]
    %v222 = vld [vmem:[#allocation10 + $0x50] sm:$0xff]
    %v223 = vld [vmem:[#allocation10 + $0x58] sm:$0xff]
    %v224 = vld [vmem:[#allocation10 + $0x60] sm:$0xf]
    %v225 = vld [vmem:[#allocation10 + $0x64] sm:$0xff]
    %v226 = vld [vmem:[#allocation10 + $0x6c] sm:$0xff]
    %v227 = vld [vmem:[#allocation10 + $0x74] sm:$0xf]
    %v228 = vld [vmem:[#allocation10 + $0x78] sm:$0xff]
    %v229 = vld [vmem:[#allocation10 + $0x80] sm:$0xff]
    %v230 = vld [vmem:[#allocation10 + $0x88] sm:$0xf]
    %v231 = vld [vmem:[#allocation10 + $0x8c] sm:$0xff]
    %v232 = vld [vmem:[#allocation10 + $0x94] sm:$0xff]
    %v233 = vld [vmem:[#allocation10 + $0x9c] sm:$0xf]
    %v234 = vld [vmem:[#allocation10 + $0xa0] sm:$0xff]
    %v235 = vld [vmem:[#allocation10 + $0xa8] sm:$0xff]
    %v236 = vld [vmem:[#allocation10 + $0xb0] sm:$0xf]
    %v237 = vld [vmem:[#allocation10 + $0xb4] sm:$0xff]
    %v238 = vld [vmem:[#allocation10 + $0xbc] sm:$0xff]
    %v239 = vld [vmem:[#allocation10 + $0xc4] sm:$0xf]
    %v240 = vld [vmem:[#allocation10 + $0xc8] sm:$0xff]
    %v241 = vld [vmem:[#allocation10 + $0xd0] sm:$0xff]
    %v242 = vld [vmem:[#allocation10 + $0xd8] sm:$0xf]
    %v243 = vld [vmem:[#allocation10 + $0xdc] sm:$0xff]
    %v244 = vld [vmem:[#allocation10 + $0xe4] sm:$0xff]
    %v245 = vld [vmem:[#allocation10 + $0xec] sm:$0xf]
    %v246 = vld [vmem:[#allocation10 + $0xf0] sm:$0xff]
    %v247 = vld [vmem:[#allocation10 + $0xf8] sm:$0xff]
    %v248 = vld [vmem:[#allocation10 + $0x100] sm:$0xf]
    %v249 = vld [vmem:[#allocation10 + $0x104] sm:$0xff]
    %v250 = vld [vmem:[#allocation10 + $0x10c] sm:$0xff]
    %v251 = vld [vmem:[#allocation10 + $0x114] sm:$0xf]
    %v252 = vld [vmem:[#allocation10 + $0x118] sm:$0xff]
    %v253 = vld [vmem:[#allocation10 + $0x120] sm:$0xff]
    %v254 = vld [vmem:[#allocation10 + $0x128] sm:$0xf]
    %v255 = vld [vmem:[#allocation10 + $0x12c] sm:$0xff]
    %v256 = vld [vmem:[#allocation10 + $0x134] sm:$0xff]
    %v257 = vld [vmem:[#allocation10 + $0x13c] sm:$0xf]
    %v306 = vunpack.c.l.b16 %v210
    %v307 = vunpack.c.h.b16 %v210
    %v308 = vunpack.c.l.b16 %v211
    %v309 = vunpack.c.h.b16 %v211
    %v310 = vunpack.c.l.b16 %v212
    %v311 = vunpack.c.l.b16 %v213
    %v312 = vunpack.c.h.b16 %v213
    %v313 = vunpack.c.l.b16 %v214
    %v314 = vunpack.c.h.b16 %v214
    %v315 = vunpack.c.l.b16 %v215
    %v316 = vunpack.c.l.b16 %v216
    %v317 = vunpack.c.h.b16 %v216
    %v318 = vunpack.c.l.b16 %v217
    %v319 = vunpack.c.h.b16 %v217
    %v320 = vunpack.c.l.b16 %v218
    %v321 = vunpack.c.l.b16 %v219
    %v322 = vunpack.c.h.b16 %v219
    %v323 = vunpack.c.l.b16 %v220
    %v324 = vunpack.c.h.b16 %v220
    %v325 = vunpack.c.l.b16 %v221
    %v326 = vunpack.c.l.b16 %v222
    %v327 = vunpack.c.h.b16 %v222
    %v328 = vunpack.c.l.b16 %v223
    %v329 = vunpack.c.h.b16 %v223
    %v330 = vunpack.c.l.b16 %v224
    %v331 = vunpack.c.l.b16 %v225
    %v332 = vunpack.c.h.b16 %v225
    %v333 = vunpack.c.l.b16 %v226
    %v334 = vunpack.c.h.b16 %v226
    %v335 = vunpack.c.l.b16 %v227
    %v336 = vunpack.c.l.b16 %v228
    %v337 = vunpack.c.h.b16 %v228
    %v338 = vunpack.c.l.b16 %v229
    %v339 = vunpack.c.h.b16 %v229
    %v340 = vunpack.c.l.b16 %v230
    %v341 = vunpack.c.l.b16 %v231
    %v342 = vunpack.c.h.b16 %v231
    %v343 = vunpack.c.l.b16 %v232
    %v344 = vunpack.c.h.b16 %v232
    %v345 = vunpack.c.l.b16 %v233
    %v346 = vunpack.c.l.b16 %v234
    %v347 = vunpack.c.h.b16 %v234
    %v348 = vunpack.c.l.b16 %v235
    %v349 = vunpack.c.h.b16 %v235
    %v350 = vunpack.c.l.b16 %v236
    %v351 = vunpack.c.l.b16 %v237
    %v352 = vunpack.c.h.b16 %v237
    %v353 = vunpack.c.l.b16 %v238
    %v354 = vunpack.c.h.b16 %v238
    %v355 = vunpack.c.l.b16 %v239
    %v356 = vunpack.c.l.b16 %v240
    %v357 = vunpack.c.h.b16 %v240
    %v358 = vunpack.c.l.b16 %v241
    %v359 = vunpack.c.h.b16 %v241
    %v360 = vunpack.c.l.b16 %v242
    %v361 = vunpack.c.l.b16 %v243
    %v362 = vunpack.c.h.b16 %v243
    %v363 = vunpack.c.l.b16 %v244
    %v364 = vunpack.c.h.b16 %v244
    %v365 = vunpack.c.l.b16 %v245
    %v366 = vunpack.c.l.b16 %v246
    %v367 = vunpack.c.h.b16 %v246
    %v368 = vunpack.c.l.b16 %v247
    %v369 = vunpack.c.h.b16 %v247
    %v370 = vunpack.c.l.b16 %v248
    %v371 = vunpack.c.l.b16 %v249
    %v372 = vunpack.c.h.b16 %v249
    %v373 = vunpack.c.l.b16 %v250
    %v374 = vunpack.c.h.b16 %v250
    %v375 = vunpack.c.l.b16 %v251
    %v376 = vunpack.c.l.b16 %v252
    %v377 = vunpack.c.h.b16 %v252
    %v378 = vunpack.c.l.b16 %v253
    %v379 = vunpack.c.h.b16 %v253
    %v380 = vunpack.c.l.b16 %v254
    %v381 = vunpack.c.l.b16 %v255
    %v382 = vunpack.c.h.b16 %v255
    %v383 = vunpack.c.l.b16 %v256
    %v384 = vunpack.c.h.b16 %v256
    %v385 = vunpack.c.l.b16 %v257
    %v386 = vpack.c.b16 %v311, %v306
    %v387 = vpack.c.b16 %v312, %v307
    %v388 = vpack.c.b16 %v313, %v308
    %v389 = vpack.c.b16 %v314, %v309
    %v390 = vpack.c.b16 %v315, %v310
    %v391 = vpack.c.b16 %v321, %v316
    %v392 = vpack.c.b16 %v322, %v317
    %v393 = vpack.c.b16 %v323, %v318
    %v394 = vpack.c.b16 %v324, %v319
    %v395 = vpack.c.b16 %v325, %v320
    %v396 = vpack.c.b16 %v331, %v326
    %v397 = vpack.c.b16 %v332, %v327
    %v398 = vpack.c.b16 %v333, %v328
    %v399 = vpack.c.b16 %v334, %v329
    %v400 = vpack.c.b16 %v335, %v330
    %v401 = vpack.c.b16 %v341, %v336
    %v402 = vpack.c.b16 %v342, %v337
    %v403 = vpack.c.b16 %v343, %v338
    %v404 = vpack.c.b16 %v344, %v339
    %v405 = vpack.c.b16 %v345, %v340
    %v406 = vpack.c.b16 %v351, %v346
    %v407 = vpack.c.b16 %v352, %v347
    %v408 = vpack.c.b16 %v353, %v348
    %v409 = vpack.c.b16 %v354, %v349
    %v410 = vpack.c.b16 %v355, %v350
    %v411 = vpack.c.b16 %v361, %v356
    %v412 = vpack.c.b16 %v362, %v357
    %v413 = vpack.c.b16 %v363, %v358
    %v414 = vpack.c.b16 %v364, %v359
    %v415 = vpack.c.b16 %v365, %v360
    %v416 = vpack.c.b16 %v371, %v366
    %v417 = vpack.c.b16 %v372, %v367
    %v418 = vpack.c.b16 %v373, %v368
    %v419 = vpack.c.b16 %v374, %v369
    %v420 = vpack.c.b16 %v375, %v370
    %v421 = vpack.c.b16 %v381, %v376
    %v422 = vpack.c.b16 %v382, %v377
    %v423 = vpack.c.b16 %v383, %v378
    %v424 = vpack.c.b16 %v384, %v379
    %v425 = vpack.c.b16 %v385, %v380
    %466 = vmatpush.bf16.msra.mxu0 %v421
    %467 = vmatpush.bf16.msra.mxu0 %v416
    %468 = vmatpush.bf16.msra.mxu0 %v411
    %469 = vmatpush.bf16.msra.mxu0 %v406
    %470 = vmatpush.bf16.msra.mxu0 %v401
    %471 = vmatpush.bf16.msra.mxu0 %v396
    %472 = vmatpush.bf16.msra.mxu0 %v391
    %473 = vmatpush.bf16.msra.mxu0 %v386
    %474 = vmatmul.bf16.gmra.mxu0 %v209
    %v475 = vpop.f32.mrf.mxu0
    %v476 = vadd.f32 0.0, %v475
    %v477 = vpop.f32.mrf.mxu0
    %v478 = vadd.f32 0.0, %v477
    %479 = vdwg.mxu0
    %480 = vmatpush.bf16.msra.mxu0 %v422
    %481 = vmatpush.bf16.msra.mxu0 %v417
    %482 = vmatpush.bf16.msra.mxu0 %v412
    %483 = vmatpush.bf16.msra.mxu0 %v407
    %484 = vmatpush.bf16.msra.mxu0 %v402
    %485 = vmatpush.bf16.msra.mxu0 %v397
    %486 = vmatpush.bf16.msra.mxu0 %v392
    %487 = vmatpush.bf16.msra.mxu0 %v387
    %488 = vmatmul.bf16.gmra.mxu0 %v209
    %v489 = vpop.f32.mrf.mxu0
    %v490 = vadd.f32 0.0, %v489
    %v491 = vpop.f32.mrf.mxu0
    %v492 = vadd.f32 0.0, %v491
    %493 = vdwg.mxu0
    %494 = vmatpush.bf16.msra.mxu0 %v423
    %495 = vmatpush.bf16.msra.mxu0 %v418
    %496 = vmatpush.bf16.msra.mxu0 %v413
    %497 = vmatpush.bf16.msra.mxu0 %v408
    %498 = vmatpush.bf16.msra.mxu0 %v403
    %499 = vmatpush.bf16.msra.mxu0 %v398
    %500 = vmatpush.bf16.msra.mxu0 %v393
    %501 = vmatpush.bf16.msra.mxu0 %v388
    %502 = vmatmul.bf16.gmra.mxu0 %v209
    %v503 = vpop.f32.mrf.mxu0
    %v504 = vadd.f32 0.0, %v503
    %v505 = vpop.f32.mrf.mxu0
    %v506 = vadd.f32 0.0, %v505
    %507 = vdwg.mxu0
    %508 = vmatpush.bf16.msra.mxu0 %v424
    %509 = vmatpush.bf16.msra.mxu0 %v419
    %510 = vmatpush.bf16.msra.mxu0 %v414
    %511 = vmatpush.bf16.msra.mxu0 %v409
    %512 = vmatpush.bf16.msra.mxu0 %v404
    %513 = vmatpush.bf16.msra.mxu0 %v399
    %514 = vmatpush.bf16.msra.mxu0 %v394
    %515 = vmatpush.bf16.msra.mxu0 %v389
    %516 = vmatmul.bf16.gmra.mxu0 %v209
    %v517 = vpop.f32.mrf.mxu0
    %v518 = vadd.f32 0.0, %v517
    %v519 = vpop.f32.mrf.mxu0
    %v520 = vadd.f32 0.0, %v519
    %521 = vdwg.mxu0
    %522 = vmatpush.bf16.msra.mxu0 %v425
    %523 = vmatpush.bf16.msra.mxu0 %v420
    %524 = vmatpush.bf16.msra.mxu0 %v415
    %525 = vmatpush.bf16.msra.mxu0 %v410
    %526 = vmatpush.bf16.msra.mxu0 %v405
    %527 = vmatpush.bf16.msra.mxu0 %v400
    %528 = vmatpush.bf16.msra.mxu0 %v395
    %529 = vmatpush.bf16.msra.mxu0 %v390
    %530 = vmatmul.bf16.gmra.mxu0 %v209
    %v531 = vpop.f32.mrf.mxu0
    %v532 = vadd.f32 0.0, %v531
    %v533 = vpop.f32.mrf.mxu0
    %v534 = vadd.f32 0.0, %v533
    %535 = vdwg.mxu0
    %v536 = vld [vmem:[#allocation5] sm:$0xff]
    %v537 = vld [vmem:[#allocation5 + $0x8] sm:$0xff]
    %v538 = vld [vmem:[#allocation5 + $0x10] sm:$0xff]
    %v539 = vld [vmem:[#allocation5 + $0x18] sm:$0xff]
    %v540 = vmul.f32 %v476, %v536
    %v541 = vmul.f32 %v490, %v537
    %v542 = vmul.f32 %v478, %v538
    %v543 = vmul.f32 %v492, %v539
    %v544 = vld [vmem:[#allocation7] sm:$0xff]
    %v545 = vld [vmem:[#allocation7 + $0x8] sm:$0xff]
    %v546 = vld [vmem:[#allocation7 + $0x10] sm:$0xff]
    %v547 = vld [vmem:[#allocation7 + $0x18] sm:$0xff]
    %v548 = vmul.f32 %v504, %v544
    %v549 = vmul.f32 %v518, %v545
    %v550 = vmul.f32 %v506, %v546
    %v551 = vmul.f32 %v520, %v547
    %v552 = vadd.f32 %v540, %v548
    %v553 = vadd.f32 %v541, %v549
    %v554 = vadd.f32 %v542, %v550
    %v555 = vadd.f32 %v543, %v551
    %v556 = vpack.c.bf16 %v552, %v552
    %v557 = vpack.c.bf16 %v554, %v554
    %v558 = vpack.c.bf16 %v553, %v553
    %v559 = vpack.c.bf16 %v555, %v555
    %v560 = vpack.c.bf16 %v532, %v532
    %v561 = vpack.c.bf16 %v534, %v534
    %v562 = vld [vmem:[#allocation8] sm:$0xff]
    %v563 = vld [vmem:[#allocation8 + $0x8] sm:$0xff]
    %v566 = vunpack.c.l.b16 %v556
    %v567 = vunpack.c.l.b16 %v557
    %v568 = vpack.c.b16 %v567, %v566
    %v571 = vunpack.c.l.b16 %v558
    %v572 = vunpack.c.l.b16 %v559
    %v573 = vpack.c.b16 %v572, %v571
    %vm574 = vcmask 261120
    %v576 = vsel %vm574, %v568, 0
    %v579 = vsel %vm574, %v573, 0
    %581 = vmatpush.bf16.xpose.msra.mxu0 0
    %582 = vmatpush.bf16.xpose.msra.mxu0 0
    %583 = vmatpush.bf16.xpose.msra.mxu0 0
    %584 = vmatpush.bf16.xpose.msra.mxu0 0
    %585 = vmatpush.bf16.xpose.msra.mxu0 0
    %586 = vmatpush.bf16.xpose.msra.mxu0 0
    %587 = vmatpush.bf16.xpose.msra.mxu0 0
    %588 = vmatpush.bf16.xpose.msra.mxu0 %v579
    %589 = vmatmul.bf16.gmra.mxu0 %v576
    %v590 = vpop.f32.mrf.mxu0
    %v591 = vadd.f32 %v562, %v590
    %v592 = vpop.f32.mrf.mxu0
    %v593 = vadd.f32 %v563, %v592
    %594 = vdwg.mxu0
    %vm595 = vcmask 130048
    %v596 = vsel %vm595, %v591, -inf
    %597 = vmax.xlane.f32.xlu0 %v596
    %v598 = vpop.xlane.xlu0 %597
    %v599 = vsel %vm595, %v593, -inf
    %600 = vmax.xlane.f32.xlu0 %v599
    %v601 = vpop.xlane.xlu0 %600
    %v602 = vsub.f32 %v591, %v598
    %v603 = vsub.f32 %v593, %v601
    %v604 = vmul.f32 %v602, 1.442695
    %v605 = vpow.pop %v604
    %v606 = vmul.f32 %v603, 1.442695
    %v607 = vpow.pop %v606
    %v608 = vsel %vm595, %v605, 0.0
    %609 = vadd.xlane.f32.xlu0 %v608
    %v610 = vpop.xlane.xlu0 %609
    %v611 = vsel %vm595, %v607, 0.0
    %612 = vadd.xlane.f32.xlu0 %v611
    %v613 = vpop.xlane.xlu0 %612
    %v614 = vrcp.pop %v610
    %v615 = vrcp.pop %v613
    %v616 = vmul.f32 %v605, %v614
    %v617 = vmul.f32 %v607, %v615
    %v618 = vpack.c.bf16 %v617, %v616
    %v621 = vunpack.c.l.b16 %v560
    %v622 = vunpack.c.l.b16 %v561
    %v623 = vpack.c.b16 %v622, %v621
    %v626 = vsel %vm595, %v618, 0
    %628 = vmatpush.bf16.msra.mxu0 0
    %629 = vmatpush.bf16.msra.mxu0 0
    %630 = vmatpush.bf16.msra.mxu0 0
    %631 = vmatpush.bf16.msra.mxu0 0
    %632 = vmatpush.bf16.msra.mxu0 0
    %633 = vmatpush.bf16.msra.mxu0 0
    %634 = vmatpush.bf16.msra.mxu0 0
    %635 = vmatpush.bf16.msra.mxu0 %v623
    %636 = vmatmul.bf16.gmra.mxu0 %v626
    %v637 = vpop.f32.mrf.mxu0
    %v638 = vadd.f32 0.0, %v637
    %v639 = vpop.f32.mrf.mxu0
    %v640 = vadd.f32 0.0, %v639
    %641 = vdwg.mxu0
    %642 = vrot.lane.b32.xlu0 %v568, 96
    %v643 = vpop.permute.xlu0 %642
    %644 = vrot.lane.b32.xlu0 %v573, 96
    %v645 = vpop.permute.xlu0 %644
    %v647 = vsel %vm574, %v643, 0
    %v650 = vsel %vm574, %v645, 0
    %652 = vmatpush.bf16.xpose.msra.mxu0 0
    %653 = vmatpush.bf16.xpose.msra.mxu0 0
    %654 = vmatpush.bf16.xpose.msra.mxu0 0
    %655 = vmatpush.bf16.xpose.msra.mxu0 0
    %656 = vmatpush.bf16.xpose.msra.mxu0 0
    %657 = vmatpush.bf16.xpose.msra.mxu0 0
    %658 = vmatpush.bf16.xpose.msra.mxu0 0
    %659 = vmatpush.bf16.xpose.msra.mxu0 %v650
    %660 = vmatmul.bf16.gmra.mxu0 %v647
    %v661 = vpop.f32.mrf.mxu0
    %v662 = vadd.f32 %v562, %v661
    %v663 = vpop.f32.mrf.mxu0
    %v664 = vadd.f32 %v563, %v663
    %665 = vdwg.mxu0
    %v666 = vsel %vm595, %v662, -inf
    %667 = vmax.xlane.f32.xlu0 %v666
    %v668 = vpop.xlane.xlu0 %667
    %v669 = vsel %vm595, %v664, -inf
    %670 = vmax.xlane.f32.xlu0 %v669
    %v671 = vpop.xlane.xlu0 %670
    %v672 = vsub.f32 %v662, %v668
    %v673 = vsub.f32 %v664, %v671
    %v674 = vmul.f32 %v672, 1.442695
    %v675 = vpow.pop %v674
    %v676 = vmul.f32 %v673, 1.442695
    %v677 = vpow.pop %v676
    %v678 = vsel %vm595, %v675, 0.0
    %679 = vadd.xlane.f32.xlu0 %v678
    %v680 = vpop.xlane.xlu0 %679
    %v681 = vsel %vm595, %v677, 0.0
    %682 = vadd.xlane.f32.xlu0 %v681
    %v683 = vpop.xlane.xlu0 %682
    %v684 = vrcp.pop %v680
    %v685 = vrcp.pop %v683
    %v686 = vmul.f32 %v675, %v684
    %v687 = vmul.f32 %v677, %v685
    %v688 = vpack.c.bf16 %v687, %v686
    %689 = vrot.lane.b32.xlu0 %v623, 96
    %v690 = vpop.permute.xlu0 %689
    %v693 = vsel %vm595, %v688, 0
    %695 = vmatpush.bf16.msra.mxu0 0
    %696 = vmatpush.bf16.msra.mxu0 0
    %697 = vmatpush.bf16.msra.mxu0 0
    %698 = vmatpush.bf16.msra.mxu0 0
    %699 = vmatpush.bf16.msra.mxu0 0
    %700 = vmatpush.bf16.msra.mxu0 0
    %701 = vmatpush.bf16.msra.mxu0 0
    %702 = vmatpush.bf16.msra.mxu0 %v690
    %703 = vmatmul.bf16.gmra.mxu0 %v693
    %v704 = vpop.f32.mrf.mxu0
    %v705 = vadd.f32 0.0, %v704
    %v706 = vpop.f32.mrf.mxu0
    %v707 = vadd.f32 0.0, %v706
    %708 = vdwg.mxu0
    %709 = vrot.lane.b32.xlu0 %v568, 64
    %v710 = vpop.permute.xlu0 %709
    %711 = vrot.lane.b32.xlu0 %v573, 64
    %v712 = vpop.permute.xlu0 %711
    %v714 = vsel %vm574, %v710, 0
    %v717 = vsel %vm574, %v712, 0
    %719 = vmatpush.bf16.xpose.msra.mxu0 0
    %720 = vmatpush.bf16.xpose.msra.mxu0 0
    %721 = vmatpush.bf16.xpose.msra.mxu0 0
    %722 = vmatpush.bf16.xpose.msra.mxu0 0
    %723 = vmatpush.bf16.xpose.msra.mxu0 0
    %724 = vmatpush.bf16.xpose.msra.mxu0 0
    %725 = vmatpush.bf16.xpose.msra.mxu0 0
    %726 = vmatpush.bf16.xpose.msra.mxu0 %v717
    %727 = vmatmul.bf16.gmra.mxu0 %v714
    %v728 = vpop.f32.mrf.mxu0
    %v729 = vadd.f32 %v562, %v728
    %v730 = vpop.f32.mrf.mxu0
    %v731 = vadd.f32 %v563, %v730
    %732 = vdwg.mxu0
    %v733 = vsel %vm595, %v729, -inf
    %734 = vmax.xlane.f32.xlu0 %v733
    %v735 = vpop.xlane.xlu0 %734
    %v736 = vsel %vm595, %v731, -inf
    %737 = vmax.xlane.f32.xlu0 %v736
    %v738 = vpop.xlane.xlu0 %737
    %v739 = vsub.f32 %v729, %v735
    %v740 = vsub.f32 %v731, %v738
    %v741 = vmul.f32 %v739, 1.442695
    %v742 = vpow.pop %v741
    %v743 = vmul.f32 %v740, 1.442695
    %v744 = vpow.pop %v743
    %v745 = vsel %vm595, %v742, 0.0
    %746 = vadd.xlane.f32.xlu0 %v745
    %v747 = vpop.xlane.xlu0 %746
    %v748 = vsel %vm595, %v744, 0.0
    %749 = vadd.xlane.f32.xlu0 %v748
    %v750 = vpop.xlane.xlu0 %749
    %v751 = vrcp.pop %v747
    %v752 = vrcp.pop %v750
    %v753 = vmul.f32 %v742, %v751
    %v754 = vmul.f32 %v744, %v752
    %v755 = vpack.c.bf16 %v754, %v753
    %756 = vrot.lane.b32.xlu0 %v623, 64
    %v757 = vpop.permute.xlu0 %756
    %v760 = vsel %vm595, %v755, 0
    %762 = vmatpush.bf16.msra.mxu0 0
    %763 = vmatpush.bf16.msra.mxu0 0
    %764 = vmatpush.bf16.msra.mxu0 0
    %765 = vmatpush.bf16.msra.mxu0 0
    %766 = vmatpush.bf16.msra.mxu0 0
    %767 = vmatpush.bf16.msra.mxu0 0
    %768 = vmatpush.bf16.msra.mxu0 0
    %769 = vmatpush.bf16.msra.mxu0 %v757
    %770 = vmatmul.bf16.gmra.mxu0 %v760
    %v771 = vpop.f32.mrf.mxu0
    %v772 = vadd.f32 0.0, %v771
    %v773 = vpop.f32.mrf.mxu0
    %v774 = vadd.f32 0.0, %v773
    %775 = vdwg.mxu0
    %776 = vrot.lane.b32.xlu0 %v568, 32
    %v777 = vpop.permute.xlu0 %776
    %778 = vrot.lane.b32.xlu0 %v573, 32
    %v779 = vpop.permute.xlu0 %778
    %v781 = vsel %vm574, %v777, 0
    %v784 = vsel %vm574, %v779, 0
    %786 = vmatpush.bf16.xpose.msra.mxu0 0
    %787 = vmatpush.bf16.xpose.msra.mxu0 0
    %788 = vmatpush.bf16.xpose.msra.mxu0 0
    %789 = vmatpush.bf16.xpose.msra.mxu0 0
    %790 = vmatpush.bf16.xpose.msra.mxu0 0
    %791 = vmatpush.bf16.xpose.msra.mxu0 0
    %792 = vmatpush.bf16.xpose.msra.mxu0 0
    %793 = vmatpush.bf16.xpose.msra.mxu0 %v784
    %794 = vmatmul.bf16.gmra.mxu0 %v781
    %v795 = vpop.f32.mrf.mxu0
    %v796 = vadd.f32 %v562, %v795
    %v797 = vpop.f32.mrf.mxu0
    %v798 = vadd.f32 %v563, %v797
    %799 = vdwg.mxu0
    %v800 = vsel %vm595, %v796, -inf
    %801 = vmax.xlane.f32.xlu0 %v800
    %v802 = vpop.xlane.xlu0 %801
    %v803 = vsel %vm595, %v798, -inf
    %804 = vmax.xlane.f32.xlu0 %v803
    %v805 = vpop.xlane.xlu0 %804
    %v806 = vsub.f32 %v796, %v802
    %v807 = vsub.f32 %v798, %v805
    %v808 = vmul.f32 %v806, 1.442695
    %v809 = vpow.pop %v808
    %v810 = vmul.f32 %v807, 1.442695
    %v811 = vpow.pop %v810
    %v812 = vsel %vm595, %v809, 0.0
    %813 = vadd.xlane.f32.xlu0 %v812
    %v814 = vpop.xlane.xlu0 %813
    %v815 = vsel %vm595, %v811, 0.0
    %816 = vadd.xlane.f32.xlu0 %v815
    %v817 = vpop.xlane.xlu0 %816
    %v818 = vrcp.pop %v814
    %v819 = vrcp.pop %v817
    %v820 = vmul.f32 %v809, %v818
    %v821 = vmul.f32 %v811, %v819
    %v822 = vpack.c.bf16 %v821, %v820
    %823 = vrot.lane.b32.xlu0 %v623, 32
    %v824 = vpop.permute.xlu0 %823
    %v827 = vsel %vm595, %v822, 0
    %829 = vmatpush.bf16.msra.mxu0 0
    %830 = vmatpush.bf16.msra.mxu0 0
    %831 = vmatpush.bf16.msra.mxu0 0
    %832 = vmatpush.bf16.msra.mxu0 0
    %833 = vmatpush.bf16.msra.mxu0 0
    %834 = vmatpush.bf16.msra.mxu0 0
    %835 = vmatpush.bf16.msra.mxu0 0
    %836 = vmatpush.bf16.msra.mxu0 %v824
    %837 = vmatmul.bf16.gmra.mxu0 %v827
    %v838 = vpop.f32.mrf.mxu0
    %v839 = vadd.f32 0.0, %v838
    %v840 = vpop.f32.mrf.mxu0
    %v841 = vadd.f32 0.0, %v840
    %842 = vdwg.mxu0
    %845 = vrot.lane.b32.xlu0 %v705, 32
    %v846 = vpop.permute.xlu0 %845
    %847 = vrot.lane.b32.xlu0 %v707, 32
    %v848 = vpop.permute.xlu0 %847
    %853 = vrot.lane.b32.xlu0 %v772, 64
    %v854 = vpop.permute.xlu0 %853
    %855 = vrot.lane.b32.xlu0 %v774, 64
    %v856 = vpop.permute.xlu0 %855
    %861 = vrot.lane.b32.xlu0 %v839, 96
    %v862 = vpop.permute.xlu0 %861
    %863 = vrot.lane.b32.xlu0 %v841, 96
    %v864 = vpop.permute.xlu0 %863
    %v867 = vsel %vm574, %v638, %v846
    %v868 = vsel %vm574, %v640, %v848
    %vm869 = vcmask 523264
    %v870 = vsel %vm869, %v867, %v854
    %v871 = vsel %vm869, %v868, %v856
    %vm872 = vcmask 785408
    %v873 = vsel %vm872, %v870, %v862
    %v874 = vsel %vm872, %v871, %v864
    %v875 = vpack.c.bf16 %v874, %v873
    %v876 = vld [vmem:[#allocation11] sm:$0xf]
    %v877 = vld [vmem:[#allocation11 + $0x4] sm:$0xf]
    %v878 = vld [vmem:[#allocation11 + $0x8] sm:$0xf]
    %v879 = vld [vmem:[#allocation11 + $0xc] sm:$0xf]
    %v880 = vld [vmem:[#allocation11 + $0x10] sm:$0xf]
    %v881 = vld [vmem:[#allocation11 + $0x14] sm:$0xf]
    %v882 = vld [vmem:[#allocation11 + $0x18] sm:$0xf]
    %v883 = vld [vmem:[#allocation11 + $0x1c] sm:$0xf]
    %v884 = vld [vmem:[#allocation11 + $0x20] sm:$0xf]
    %v885 = vld [vmem:[#allocation11 + $0x24] sm:$0xf]
    %v886 = vld [vmem:[#allocation11 + $0x28] sm:$0xf]
    %v887 = vld [vmem:[#allocation11 + $0x2c] sm:$0xf]
    %v888 = vld [vmem:[#allocation11 + $0x30] sm:$0xf]
    %v889 = vld [vmem:[#allocation11 + $0x34] sm:$0xf]
    %v890 = vld [vmem:[#allocation11 + $0x38] sm:$0xf]
    %v891 = vld [vmem:[#allocation11 + $0x3c] sm:$0xf]
    %v908 = vunpack.c.l.b16 %v876
    %v909 = vunpack.c.l.b16 %v877
    %v910 = vunpack.c.l.b16 %v878
    %v911 = vunpack.c.l.b16 %v879
    %v912 = vunpack.c.l.b16 %v880
    %v913 = vunpack.c.l.b16 %v881
    %v914 = vunpack.c.l.b16 %v882
    %v915 = vunpack.c.l.b16 %v883
    %v916 = vunpack.c.l.b16 %v884
    %v917 = vunpack.c.l.b16 %v885
    %v918 = vunpack.c.l.b16 %v886
    %v919 = vunpack.c.l.b16 %v887
    %v920 = vunpack.c.l.b16 %v888
    %v921 = vunpack.c.l.b16 %v889
    %v922 = vunpack.c.l.b16 %v890
    %v923 = vunpack.c.l.b16 %v891
    %v924 = vpack.c.b16 %v909, %v908
    %v925 = vpack.c.b16 %v911, %v910
    %v926 = vpack.c.b16 %v913, %v912
    %v927 = vpack.c.b16 %v915, %v914
    %v928 = vpack.c.b16 %v917, %v916
    %v929 = vpack.c.b16 %v919, %v918
    %v930 = vpack.c.b16 %v921, %v920
    %v931 = vpack.c.b16 %v923, %v922
    %940 = vmatpush.bf16.msra.mxu0 %v931
    %941 = vmatpush.bf16.msra.mxu0 %v930
    %942 = vmatpush.bf16.msra.mxu0 %v929
    %943 = vmatpush.bf16.msra.mxu0 %v928
    %944 = vmatpush.bf16.msra.mxu0 %v927
    %945 = vmatpush.bf16.msra.mxu0 %v926
    %946 = vmatpush.bf16.msra.mxu0 %v925
    %947 = vmatpush.bf16.msra.mxu0 %v924
    %948 = vmatmul.bf16.gmra.mxu0 %v875
    %v949 = vpop.f32.mrf.mxu0
    %v950 = vadd.f32 0.0, %v949
    %v951 = vpop.f32.mrf.mxu0
    %v952 = vadd.f32 0.0, %v951
    %953 = vdwg.mxu0
    %v954 = vadd.f32 %v162, %v950
    %v955 = vadd.f32 %v163, %v952
    %v956 = vld [vmem:[%s7] sm:$0x1]
    %v957 = vmul.f32 %v954, %v954
    %v958 = vmul.f32 %v955, %v955
    %959 = vadd.xlane.f32.xlu0 %v957
    %v960 = vpop.xlane.xlu0 %959
    %961 = vadd.xlane.f32.xlu0 %v958
    %v962 = vpop.xlane.xlu0 %961
    %v963 = vmul.f32 %v960, %v177
    %v964 = vmul.f32 %v962, %v177
    %v965 = vadd.f32 %v963, 1e-06
    %v966 = vadd.f32 %v964, 1e-06
    %v967 = vrsqrt.pop %v965
    %v968 = vmul.f32 %v967, %v965
    %v969 = vmul.f32 %v968, %v967
    %v970 = vmul.f32 0.5, %v969
    %v971 = vsub.f32 1.5, %v970
    %v972 = vmul.f32 %v967, %v971
    %vm973 = vweird.f32 %v965
    %vm974 = vweird.f32 %v967
    %vm975 = vmor %vm973, %vm974
    %v976 = vsel %vm975, %v967, %v972
    %v977 = vrsqrt.pop %v966
    %v978 = vmul.f32 %v977, %v966
    %v979 = vmul.f32 %v978, %v977
    %v980 = vmul.f32 0.5, %v979
    %v981 = vsub.f32 1.5, %v980
    %v982 = vmul.f32 %v977, %v981
    %vm983 = vweird.f32 %v966
    %vm984 = vweird.f32 %v977
    %vm985 = vmor %vm983, %vm984
    %v986 = vsel %vm985, %v977, %v982
    %v987 = vmul.f32 %v954, %v976
    %v988 = vmul.f32 %v955, %v986
    %v990 = vperm.slane %v956, 0
    %v992 = vmul.f32 %v987, %v990
    %v993 = vmul.f32 %v988, %v990
    %v994 = vpack.c.bf16 %v993, %v992
    %v995 = vld [vmem:[#allocation13] sm:$0xff]
    %v996 = vld [vmem:[#allocation13 + $0x8] sm:$0xff]
    %v997 = vld [vmem:[#allocation13 + $0x10] sm:$0xff]
    %v998 = vld [vmem:[#allocation13 + $0x18] sm:$0xff]
    %v999 = vld [vmem:[#allocation13 + $0x20] sm:$0xff]
    %v1000 = vld [vmem:[#allocation13 + $0x28] sm:$0xff]
    %v1001 = vld [vmem:[#allocation13 + $0x30] sm:$0xff]
    %v1002 = vld [vmem:[#allocation13 + $0x38] sm:$0xff]
    %v1003 = vld [vmem:[#allocation13 + $0x40] sm:$0xff]
    %v1004 = vld [vmem:[#allocation13 + $0x48] sm:$0xff]
    %v1005 = vld [vmem:[#allocation13 + $0x50] sm:$0xff]
    %v1006 = vld [vmem:[#allocation13 + $0x58] sm:$0xff]
    %v1007 = vld [vmem:[#allocation13 + $0x60] sm:$0xff]
    %v1008 = vld [vmem:[#allocation13 + $0x68] sm:$0xff]
    %v1009 = vld [vmem:[#allocation13 + $0x70] sm:$0xff]
    %v1010 = vld [vmem:[#allocation13 + $0x78] sm:$0xff]
    %v1011 = vld [vmem:[#allocation13 + $0x80] sm:$0xff]
    %v1012 = vld [vmem:[#allocation13 + $0x88] sm:$0xff]
    %v1013 = vld [vmem:[#allocation13 + $0x90] sm:$0xff]
    %v1014 = vld [vmem:[#allocation13 + $0x98] sm:$0xff]
    %v1015 = vld [vmem:[#allocation13 + $0xa0] sm:$0xff]
    %v1016 = vld [vmem:[#allocation13 + $0xa8] sm:$0xff]
    %v1017 = vld [vmem:[#allocation13 + $0xb0] sm:$0xff]
    %v1018 = vld [vmem:[#allocation13 + $0xb8] sm:$0xff]
    %v1019 = vld [vmem:[#allocation13 + $0xc0] sm:$0xff]
    %v1020 = vld [vmem:[#allocation13 + $0xc8] sm:$0xff]
    %v1021 = vld [vmem:[#allocation13 + $0xd0] sm:$0xff]
    %v1022 = vld [vmem:[#allocation13 + $0xd8] sm:$0xff]
    %v1023 = vld [vmem:[#allocation13 + $0xe0] sm:$0xff]
    %v1024 = vld [vmem:[#allocation13 + $0xe8] sm:$0xff]
    %v1025 = vld [vmem:[#allocation13 + $0xf0] sm:$0xff]
    %v1026 = vld [vmem:[#allocation13 + $0xf8] sm:$0xff]
    %v1059 = vunpack.c.l.b16 %v995
    %v1060 = vunpack.c.h.b16 %v995
    %v1061 = vunpack.c.l.b16 %v996
    %v1062 = vunpack.c.h.b16 %v996
    %v1063 = vunpack.c.l.b16 %v997
    %v1064 = vunpack.c.h.b16 %v997
    %v1065 = vunpack.c.l.b16 %v998
    %v1066 = vunpack.c.h.b16 %v998
    %v1067 = vunpack.c.l.b16 %v999
    %v1068 = vunpack.c.h.b16 %v999
    %v1069 = vunpack.c.l.b16 %v1000
    %v1070 = vunpack.c.h.b16 %v1000
    %v1071 = vunpack.c.l.b16 %v1001
    %v1072 = vunpack.c.h.b16 %v1001
    %v1073 = vunpack.c.l.b16 %v1002
    %v1074 = vunpack.c.h.b16 %v1002
    %v1075 = vunpack.c.l.b16 %v1003
    %v1076 = vunpack.c.h.b16 %v1003
    %v1077 = vunpack.c.l.b16 %v1004
    %v1078 = vunpack.c.h.b16 %v1004
    %v1079 = vunpack.c.l.b16 %v1005
    %v1080 = vunpack.c.h.b16 %v1005
    %v1081 = vunpack.c.l.b16 %v1006
    %v1082 = vunpack.c.h.b16 %v1006
    %v1083 = vunpack.c.l.b16 %v1007
    %v1084 = vunpack.c.h.b16 %v1007
    %v1085 = vunpack.c.l.b16 %v1008
    %v1086 = vunpack.c.h.b16 %v1008
    %v1087 = vunpack.c.l.b16 %v1009
    %v1088 = vunpack.c.h.b16 %v1009
    %v1089 = vunpack.c.l.b16 %v1010
    %v1090 = vunpack.c.h.b16 %v1010
    %v1091 = vunpack.c.l.b16 %v1011
    %v1092 = vunpack.c.h.b16 %v1011
    %v1093 = vunpack.c.l.b16 %v1012
    %v1094 = vunpack.c.h.b16 %v1012
    %v1095 = vunpack.c.l.b16 %v1013
    %v1096 = vunpack.c.h.b16 %v1013
    %v1097 = vunpack.c.l.b16 %v1014
    %v1098 = vunpack.c.h.b16 %v1014
    %v1099 = vunpack.c.l.b16 %v1015
    %v1100 = vunpack.c.h.b16 %v1015
    %v1101 = vunpack.c.l.b16 %v1016
    %v1102 = vunpack.c.h.b16 %v1016
    %v1103 = vunpack.c.l.b16 %v1017
    %v1104 = vunpack.c.h.b16 %v1017
    %v1105 = vunpack.c.l.b16 %v1018
    %v1106 = vunpack.c.h.b16 %v1018
    %v1107 = vunpack.c.l.b16 %v1019
    %v1108 = vunpack.c.h.b16 %v1019
    %v1109 = vunpack.c.l.b16 %v1020
    %v1110 = vunpack.c.h.b16 %v1020
    %v1111 = vunpack.c.l.b16 %v1021
    %v1112 = vunpack.c.h.b16 %v1021
    %v1113 = vunpack.c.l.b16 %v1022
    %v1114 = vunpack.c.h.b16 %v1022
    %v1115 = vunpack.c.l.b16 %v1023
    %v1116 = vunpack.c.h.b16 %v1023
    %v1117 = vunpack.c.l.b16 %v1024
    %v1118 = vunpack.c.h.b16 %v1024
    %v1119 = vunpack.c.l.b16 %v1025
    %v1120 = vunpack.c.h.b16 %v1025
    %v1121 = vunpack.c.l.b16 %v1026
    %v1122 = vunpack.c.h.b16 %v1026
    %v1123 = vpack.c.b16 %v1063, %v1059
    %v1124 = vpack.c.b16 %v1064, %v1060
    %v1125 = vpack.c.b16 %v1065, %v1061
    %v1126 = vpack.c.b16 %v1066, %v1062
    %v1127 = vpack.c.b16 %v1071, %v1067
    %v1128 = vpack.c.b16 %v1072, %v1068
    %v1129 = vpack.c.b16 %v1073, %v1069
    %v1130 = vpack.c.b16 %v1074, %v1070
    %v1131 = vpack.c.b16 %v1079, %v1075
    %v1132 = vpack.c.b16 %v1080, %v1076
    %v1133 = vpack.c.b16 %v1081, %v1077
    %v1134 = vpack.c.b16 %v1082, %v1078
    %v1135 = vpack.c.b16 %v1087, %v1083
    %v1136 = vpack.c.b16 %v1088, %v1084
    %v1137 = vpack.c.b16 %v1089, %v1085
    %v1138 = vpack.c.b16 %v1090, %v1086
    %v1139 = vpack.c.b16 %v1095, %v1091
    %v1140 = vpack.c.b16 %v1096, %v1092
    %v1141 = vpack.c.b16 %v1097, %v1093
    %v1142 = vpack.c.b16 %v1098, %v1094
    %v1143 = vpack.c.b16 %v1103, %v1099
    %v1144 = vpack.c.b16 %v1104, %v1100
    %v1145 = vpack.c.b16 %v1105, %v1101
    %v1146 = vpack.c.b16 %v1106, %v1102
    %v1147 = vpack.c.b16 %v1111, %v1107
    %v1148 = vpack.c.b16 %v1112, %v1108
    %v1149 = vpack.c.b16 %v1113, %v1109
    %v1150 = vpack.c.b16 %v1114, %v1110
    %v1151 = vpack.c.b16 %v1119, %v1115
    %v1152 = vpack.c.b16 %v1120, %v1116
    %v1153 = vpack.c.b16 %v1121, %v1117
    %v1154 = vpack.c.b16 %v1122, %v1118
    %1187 = vmatpush.bf16.msra.mxu0 %v1151
    %1188 = vmatpush.bf16.msra.mxu0 %v1147
    %1189 = vmatpush.bf16.msra.mxu0 %v1143
    %1190 = vmatpush.bf16.msra.mxu0 %v1139
    %1191 = vmatpush.bf16.msra.mxu0 %v1135
    %1192 = vmatpush.bf16.msra.mxu0 %v1131
    %1193 = vmatpush.bf16.msra.mxu0 %v1127
    %1194 = vmatpush.bf16.msra.mxu0 %v1123
    %1195 = vmatmul.bf16.gmra.mxu0 %v994
    %v1196 = vpop.f32.mrf.mxu0
    %v1197 = vadd.f32 0.0, %v1196
    %v1198 = vpop.f32.mrf.mxu0
    %v1199 = vadd.f32 0.0, %v1198
    %1200 = vdwg.mxu0
    %1201 = vmatpush.bf16.msra.mxu0 %v1152
    %1202 = vmatpush.bf16.msra.mxu0 %v1148
    %1203 = vmatpush.bf16.msra.mxu0 %v1144
    %1204 = vmatpush.bf16.msra.mxu0 %v1140
    %1205 = vmatpush.bf16.msra.mxu0 %v1136
    %1206 = vmatpush.bf16.msra.mxu0 %v1132
    %1207 = vmatpush.bf16.msra.mxu0 %v1128
    %1208 = vmatpush.bf16.msra.mxu0 %v1124
    %1209 = vmatmul.bf16.gmra.mxu0 %v994
    %v1210 = vpop.f32.mrf.mxu0
    %v1211 = vadd.f32 0.0, %v1210
    %v1212 = vpop.f32.mrf.mxu0
    %v1213 = vadd.f32 0.0, %v1212
    %1214 = vdwg.mxu0
    %1215 = vmatpush.bf16.msra.mxu0 %v1153
    %1216 = vmatpush.bf16.msra.mxu0 %v1149
    %1217 = vmatpush.bf16.msra.mxu0 %v1145
    %1218 = vmatpush.bf16.msra.mxu0 %v1141
    %1219 = vmatpush.bf16.msra.mxu0 %v1137
    %1220 = vmatpush.bf16.msra.mxu0 %v1133
    %1221 = vmatpush.bf16.msra.mxu0 %v1129
    %1222 = vmatpush.bf16.msra.mxu0 %v1125
    %1223 = vmatmul.bf16.gmra.mxu0 %v994
    %v1224 = vpop.f32.mrf.mxu0
    %v1225 = vadd.f32 0.0, %v1224
    %v1226 = vpop.f32.mrf.mxu0
    %v1227 = vadd.f32 0.0, %v1226
    %1228 = vdwg.mxu0
    %1229 = vmatpush.bf16.msra.mxu0 %v1154
    %1230 = vmatpush.bf16.msra.mxu0 %v1150
    %1231 = vmatpush.bf16.msra.mxu0 %v1146
    %1232 = vmatpush.bf16.msra.mxu0 %v1142
    %1233 = vmatpush.bf16.msra.mxu0 %v1138
    %1234 = vmatpush.bf16.msra.mxu0 %v1134
    %1235 = vmatpush.bf16.msra.mxu0 %v1130
    %1236 = vmatpush.bf16.msra.mxu0 %v1126
    %1237 = vmatmul.bf16.gmra.mxu0 %v994
    %v1238 = vpop.f32.mrf.mxu0
    %v1239 = vadd.f32 0.0, %v1238
    %v1240 = vpop.f32.mrf.mxu0
    %v1241 = vadd.f32 0.0, %v1240
    %1242 = vdwg.mxu0
    %v1243 = vxor.u32 %v1197, 2147483648
    %v1244 = vxor.u32 %v1211, 2147483648
    %v1245 = vxor.u32 %v1199, 2147483648
    %v1246 = vxor.u32 %v1213, 2147483648
    %v1247 = vmul.f32 %v1243, 1.442695
    %v1248 = vpow.pop %v1247
    %v1249 = vmul.f32 %v1244, 1.442695
    %v1250 = vpow.pop %v1249
    %v1251 = vmul.f32 %v1245, 1.442695
    %v1252 = vpow.pop %v1251
    %v1253 = vmul.f32 %v1246, 1.442695
    %v1254 = vpow.pop %v1253
    %v1255 = vadd.f32 %v1248, 1.0
    %v1256 = vadd.f32 %v1250, 1.0
    %v1257 = vadd.f32 %v1252, 1.0
    %v1258 = vadd.f32 %v1254, 1.0
    %v1259 = vrcp.pop %v1255
    %v1260 = vmul.f32 %v1255, %v1259
    %v1261 = vsub.f32 1.0, %v1260
    %v1262 = vmul.f32 %v1259, %v1261
    %v1263 = vadd.f32 %v1259, %v1262
    %vm1264 = vweird.f32 %v1255
    %vm1265 = vweird.f32 %v1259
    %vm1266 = vmor %vm1264, %vm1265
    %v1267 = vsel %vm1266, %v1259, %v1263
    %v1268 = vand.u32 2147483647, %v1255
    %vm1269 = vcmp.eq.f32.partialorder %v1268, 8.507059e+37
    %v1270 = vand.u32 %v1255, 2147483648
    %v1271 = vor.u32 1.1754944e-38, %v1270
    %v1272 = vsel %vm1269, %v1271, %v1267
    %v1273 = vmul.f32 1.0, %v1272
    %v1274 = vrcp.pop %v1256
    %v1275 = vmul.f32 %v1256, %v1274
    %v1276 = vsub.f32 1.0, %v1275
    %v1277 = vmul.f32 %v1274, %v1276
    %v1278 = vadd.f32 %v1274, %v1277
    %vm1279 = vweird.f32 %v1256
    %vm1280 = vweird.f32 %v1274
    %vm1281 = vmor %vm1279, %vm1280
    %v1282 = vsel %vm1281, %v1274, %v1278
    %v1283 = vand.u32 2147483647, %v1256
    %vm1284 = vcmp.eq.f32.partialorder %v1283, 8.507059e+37
    %v1285 = vand.u32 %v1256, 2147483648
    %v1286 = vor.u32 1.1754944e-38, %v1285
    %v1287 = vsel %vm1284, %v1286, %v1282
    %v1288 = vmul.f32 1.0, %v1287
    %v1289 = vrcp.pop %v1257
    %v1290 = vmul.f32 %v1257, %v1289
    %v1291 = vsub.f32 1.0, %v1290
    %v1292 = vmul.f32 %v1289, %v1291
    %v1293 = vadd.f32 %v1289, %v1292
    %vm1294 = vweird.f32 %v1257
    %vm1295 = vweird.f32 %v1289
    %vm1296 = vmor %vm1294, %vm1295
    %v1297 = vsel %vm1296, %v1289, %v1293
    %v1298 = vand.u32 2147483647, %v1257
    %vm1299 = vcmp.eq.f32.partialorder %v1298, 8.507059e+37
    %v1300 = vand.u32 %v1257, 2147483648
    %v1301 = vor.u32 1.1754944e-38, %v1300
    %v1302 = vsel %vm1299, %v1301, %v1297
    %v1303 = vmul.f32 1.0, %v1302
    %v1304 = vrcp.pop %v1258
    %v1305 = vmul.f32 %v1258, %v1304
    %v1306 = vsub.f32 1.0, %v1305
    %v1307 = vmul.f32 %v1304, %v1306
    %v1308 = vadd.f32 %v1304, %v1307
    %vm1309 = vweird.f32 %v1258
    %vm1310 = vweird.f32 %v1304
    %vm1311 = vmor %vm1309, %vm1310
    %v1312 = vsel %vm1311, %v1304, %v1308
    %v1313 = vand.u32 2147483647, %v1258
    %vm1314 = vcmp.eq.f32.partialorder %v1313, 8.507059e+37
    %v1315 = vand.u32 %v1258, 2147483648
    %v1316 = vor.u32 1.1754944e-38, %v1315
    %v1317 = vsel %vm1314, %v1316, %v1312
    %v1318 = vmul.f32 1.0, %v1317
    %v1319 = vmul.f32 %v1197, %v1273
    %v1320 = vmul.f32 %v1211, %v1288
    %v1321 = vmul.f32 %v1199, %v1303
    %v1322 = vmul.f32 %v1213, %v1318
    %v1323 = vmul.f32 %v1319, %v1225
    %v1324 = vmul.f32 %v1320, %v1239
    %v1325 = vmul.f32 %v1321, %v1227
    %v1326 = vmul.f32 %v1322, %v1241
    %v1327 = vpack.c.bf16 %v1325, %v1323
    %v1328 = vpack.c.bf16 %v1326, %v1324
    %v1329 = vld [vmem:[#allocation14] sm:$0xf]
    %v1330 = vld [vmem:[#allocation14 + $0x4] sm:$0xf]
    %v1331 = vld [vmem:[#allocation14 + $0x8] sm:$0xf]
    %v1332 = vld [vmem:[#allocation14 + $0xc] sm:$0xf]
    %v1333 = vld [vmem:[#allocation14 + $0x10] sm:$0xf]
    %v1334 = vld [vmem:[#allocation14 + $0x14] sm:$0xf]
    %v1335 = vld [vmem:[#allocation14 + $0x18] sm:$0xf]
    %v1336 = vld [vmem:[#allocation14 + $0x1c] sm:$0xf]
    %v1337 = vld [vmem:[#allocation14 + $0x20] sm:$0xf]
    %v1338 = vld [vmem:[#allocation14 + $0x24] sm:$0xf]
    %v1339 = vld [vmem:[#allocation14 + $0x28] sm:$0xf]
    %v1340 = vld [vmem:[#allocation14 + $0x2c] sm:$0xf]
    %v1341 = vld [vmem:[#allocation14 + $0x30] sm:$0xf]
    %v1342 = vld [vmem:[#allocation14 + $0x34] sm:$0xf]
    %v1343 = vld [vmem:[#allocation14 + $0x38] sm:$0xf]
    %v1344 = vld [vmem:[#allocation14 + $0x3c] sm:$0xf]
    %v1345 = vld [vmem:[#allocation14 + $0x40] sm:$0xf]
    %v1346 = vld [vmem:[#allocation14 + $0x44] sm:$0xf]
    %v1347 = vld [vmem:[#allocation14 + $0x48] sm:$0xf]
    %v1348 = vld [vmem:[#allocation14 + $0x4c] sm:$0xf]
    %v1349 = vld [vmem:[#allocation14 + $0x50] sm:$0xf]
    %v1350 = vld [vmem:[#allocation14 + $0x54] sm:$0xf]
    %v1351 = vld [vmem:[#allocation14 + $0x58] sm:$0xf]
    %v1352 = vld [vmem:[#allocation14 + $0x5c] sm:$0xf]
    %v1353 = vld [vmem:[#allocation14 + $0x60] sm:$0xf]
    %v1354 = vld [vmem:[#allocation14 + $0x64] sm:$0xf]
    %v1355 = vld [vmem:[#allocation14 + $0x68] sm:$0xf]
    %v1356 = vld [vmem:[#allocation14 + $0x6c] sm:$0xf]
    %v1357 = vld [vmem:[#allocation14 + $0x70] sm:$0xf]
    %v1358 = vld [vmem:[#allocation14 + $0x74] sm:$0xf]
    %v1359 = vld [vmem:[#allocation14 + $0x78] sm:$0xf]
    %v1360 = vld [vmem:[#allocation14 + $0x7c] sm:$0xf]
    %v1393 = vunpack.c.l.b16 %v1329
    %v1394 = vunpack.c.l.b16 %v1330
    %v1395 = vunpack.c.l.b16 %v1331
    %v1396 = vunpack.c.l.b16 %v1332
    %v1397 = vunpack.c.l.b16 %v1333
    %v1398 = vunpack.c.l.b16 %v1334
    %v1399 = vunpack.c.l.b16 %v1335
    %v1400 = vunpack.c.l.b16 %v1336
    %v1401 = vunpack.c.l.b16 %v1337
    %v1402 = vunpack.c.l.b16 %v1338
    %v1403 = vunpack.c.l.b16 %v1339
    %v1404 = vunpack.c.l.b16 %v1340
    %v1405 = vunpack.c.l.b16 %v1341
    %v1406 = vunpack.c.l.b16 %v1342
    %v1407 = vunpack.c.l.b16 %v1343
    %v1408 = vunpack.c.l.b16 %v1344
    %v1409 = vunpack.c.l.b16 %v1345
    %v1410 = vunpack.c.l.b16 %v1346
    %v1411 = vunpack.c.l.b16 %v1347
    %v1412 = vunpack.c.l.b16 %v1348
    %v1413 = vunpack.c.l.b16 %v1349
    %v1414 = vunpack.c.l.b16 %v1350
    %v1415 = vunpack.c.l.b16 %v1351
    %v1416 = vunpack.c.l.b16 %v1352
    %v1417 = vunpack.c.l.b16 %v1353
    %v1418 = vunpack.c.l.b16 %v1354
    %v1419 = vunpack.c.l.b16 %v1355
    %v1420 = vunpack.c.l.b16 %v1356
    %v1421 = vunpack.c.l.b16 %v1357
    %v1422 = vunpack.c.l.b16 %v1358
    %v1423 = vunpack.c.l.b16 %v1359
    %v1424 = vunpack.c.l.b16 %v1360
    %v1425 = vpack.c.b16 %v1394, %v1393
    %v1426 = vpack.c.b16 %v1396, %v1395
    %v1427 = vpack.c.b16 %v1398, %v1397
    %v1428 = vpack.c.b16 %v1400, %v1399
    %v1429 = vpack.c.b16 %v1402, %v1401
    %v1430 = vpack.c.b16 %v1404, %v1403
    %v1431 = vpack.c.b16 %v1406, %v1405
    %v1432 = vpack.c.b16 %v1408, %v1407
    %v1433 = vpack.c.b16 %v1410, %v1409
    %v1434 = vpack.c.b16 %v1412, %v1411
    %v1435 = vpack.c.b16 %v1414, %v1413
    %v1436 = vpack.c.b16 %v1416, %v1415
    %v1437 = vpack.c.b16 %v1418, %v1417
    %v1438 = vpack.c.b16 %v1420, %v1419
    %v1439 = vpack.c.b16 %v1422, %v1421
    %v1440 = vpack.c.b16 %v1424, %v1423
    %1457 = vmatpush.bf16.msra.mxu0 %v1432
    %1458 = vmatpush.bf16.msra.mxu0 %v1431
    %1459 = vmatpush.bf16.msra.mxu0 %v1430
    %1460 = vmatpush.bf16.msra.mxu0 %v1429
    %1461 = vmatpush.bf16.msra.mxu0 %v1428
    %1462 = vmatpush.bf16.msra.mxu0 %v1427
    %1463 = vmatpush.bf16.msra.mxu0 %v1426
    %1464 = vmatpush.bf16.msra.mxu0 %v1425
    %1465 = vmatmul.bf16.gmra.mxu0 %v1327
    %v1466 = vpop.f32.mrf.mxu0
    %v1467 = vadd.f32 0.0, %v1466
    %v1468 = vpop.f32.mrf.mxu0
    %v1469 = vadd.f32 0.0, %v1468
    %1470 = vdwg.mxu0
    %1471 = vmatpush.bf16.msra.mxu0 %v1440
    %1472 = vmatpush.bf16.msra.mxu0 %v1439
    %1473 = vmatpush.bf16.msra.mxu0 %v1438
    %1474 = vmatpush.bf16.msra.mxu0 %v1437
    %1475 = vmatpush.bf16.msra.mxu0 %v1436
    %1476 = vmatpush.bf16.msra.mxu0 %v1435
    %1477 = vmatpush.bf16.msra.mxu0 %v1434
    %1478 = vmatpush.bf16.msra.mxu0 %v1433
    %1479 = vmatmul.bf16.gmra.mxu0 %v1328
    %v1480 = vpop.f32.mrf.mxu0
    %v1481 = vadd.f32 %v1467, %v1480
    %v1482 = vpop.f32.mrf.mxu0
    %v1483 = vadd.f32 %v1469, %v1482
    %1484 = vdwg.mxu0
    %v1485 = vadd.f32 %v954, %v1481
    %v1486 = vadd.f32 %v955, %v1483
    %1487 = vst [vmem:[#allocation16] sm:$0xff] %v1485
    %1488 = vst [vmem:[#allocation16 + $0x8] sm:$0xff] %v1486
    // Predicated region
    $region74: #{tpu_custom_call.1} parent=1 // pred_check
      _
    $region75: #{tpu_custom_call.1} parent=1 // pred_check_branch
      %1490 = sbr.rel (0) target = $region77
    $region76: #{tpu_custom_call.1} parent=1 // pred_region
      %1492 = vsyncadd [#allocation4], 0
      %s1493 = sshll.u32 [#allocation16], 4
      %s1494 = int_to_ptr.vmem [resolvable:$true] %s1493
      %s1495 = sshll.u32 %s10, 4
      %s1496 = int_to_ptr.hbm [resolvable:$true] %s1495
      %1501 = dma.vmem_to_hbm [thread:$0]  %s1494, 256, %s1496, [#allocation4], 128, 128, 8
    $region77: #{tpu_custom_call.1} parent=1 // pred_fallthru
      _
    // Predicated region
    $region78: #{tpu_custom_call.1} parent=1 // pred_check
      _
    $region79: #{tpu_custom_call.1} parent=1 // pred_check_branch
      %1503 = sbr.rel (0) target = $region81
    $region80: #{tpu_custom_call.1} parent=1 // pred_region
      %1505 = dma.done [#allocation4], 256
    $region81: #{tpu_custom_call.1} parent=1 // pred_fallthru
      _
    %1506 = vsyncpa [#allocation3], 1
    %1507 = vsyncpa [#allocation6], 1
    %1508 = vsyncpa [#allocation9], 1
    %1509 = vsyncpa [#allocation12], 1
    %1510 = vsyncpa [#allocation15], 1
    %1511 = vsyncpa [#allocation4], 1

</llo_original>
